<compile_context>
chip_gen: v7x
topology: tpu7x:2x2x1
jax: 0.10.0
libtpu: 0.0.40
codegen_flags: <defaults>
</compile_context>

<pallas_src>
from typing import NamedTuple

import jax
import jax.numpy as jnp
from jax.experimental import pallas as pl
from jax.experimental.pallas import tpu as pltpu

_MIB = 1024 * 1024
_NEG_BIG = -1e30          # effective -inf for padded word columns (avoids inf math)


# --------------------------------------------------------------------------- #
# Kernel
# --------------------------------------------------------------------------- #
def _hsoftmax_kernel(x_ref, wcf_ref, bcf_ref, wct_ref, bct_ref, ww_ref, bw_ref,
                     out_ref):
    """One grid step: (cluster tile j, batch tile i).

    x_ref  : (tm, Hp)      bf16  hidden states (zero-padded hidden dim)
    wcf_ref: (Hp, C)       bf16  full cluster projection (for the cluster LSE)
    bcf_ref: (1, C)        f32
    wct_ref: (Hp, tc)      bf16  this cluster tile's columns of Wc (same HBM array)
    bct_ref: (1, tc)       f32
    ww_ref : (Hp, tc*Vp)   bf16  this cluster tile's word projection, (H,C,V)-major
    bw_ref : (tc, Vp)      f32   (-1e30 on V-padding columns)
    out_ref: (tm, tc, Vp)  f32/bf16
    """
    tm, tc, Vp = out_ref.shape
    x = x_ref[...]                                                   # (tm, Hp)

    # ---- level 1: cluster log-softmax --------------------------------------
    # The normalizer needs ALL clusters; this (Hp, C) matmul is tiny compared
    # to the word matmul, so recomputing it per cluster tile is cheap and all
    # indexing stays static.
    cl_full = jnp.dot(x, wcf_ref[...], preferred_element_type=jnp.float32)
    cl_full = cl_full + bcf_ref[...]                                 # (tm, C)
    c_max = jnp.max(cl_full, axis=-1, keepdims=True)
    c_lse = c_max + jnp.log(jnp.sum(jnp.exp(cl_full - c_max), axis=-1,
                                    keepdims=True))                  # (tm, 1)

    cl_tile = jnp.dot(x, wct_ref[...], preferred_element_type=jnp.float32)
    cluster_logp = cl_tile + bct_ref[...] - c_lse                    # (tm, tc)

    # ---- level 2: word log-softmax (one wide lane-dense MXU matmul) --------
    wl = jnp.dot(x, ww_ref[...], preferred_element_type=jnp.float32)
    wl = wl.reshape(tm, tc, Vp) + bw_ref[...][None, :, :]            # (tm, tc, Vp)
    w_max = jnp.max(wl, axis=-1, keepdims=True)
    w_lse = w_max + jnp.log(jnp.sum(jnp.exp(wl - w_max), axis=-1,
                                    keepdims=True))                  # (tm, tc, 1)

    # Fused epilogue: one per-(row, cluster) correction, single add at store.
    #   log P(word) = word_logit - word_lse + cluster_logp
    corr = cluster_logp[:, :, None] - w_lse                          # (tm, tc, 1)
    out_ref[...] = (wl + corr).astype(out_ref.dtype)


# --------------------------------------------------------------------------- #
# Host-side helpers
# --------------------------------------------------------------------------- #
def _round_up(n, m):
    return ((n + m - 1) // m) * m


def _vmem_budget():
    """(tile-selection budget, physical per-core VMEM) in bytes."""
    phys = 64 * _MIB                                   # conservative fallback (v7x)
    try:
        info = pltpu.get_tpu_info()
        phys = int(getattr(info, "vmem_capacity_bytes", phys)) or phys
    except Exception:
        pass
    phys = max(phys, 64 * _MIB)
    budget = min(phys - 16 * _MIB, (4 * phys) // 5)    # ~48 MiB v7x, ~102 MiB v5e/v6e
    return max(budget, 24 * _MIB), phys


def _estimate_vmem(tm, tc, Hp, C, Vp, in_isz, out_isz, ww_bufs):
    """Conservative VMEM footprint: pipelined buffers + f32 softmax temporaries."""
    return int(
        2 * tm * Hp * in_isz                      # x tile (double-buffered)
        + 2 * Hp * C * in_isz                     # full Wc (resident)
        + 2 * Hp * tc * in_isz                    # Wc cluster-tile columns
        + 4 * C * 4 + 4 * tc * 4                  # cluster biases
        + ww_bufs * Hp * tc * Vp * in_isz         # word-weight tile (dominant)
        + 2 * tc * Vp * 4                         # word-bias tile
        + 2 * tm * tc * Vp * out_isz              # output tile (double-buffered)
        + 4 * tm * tc * Vp * 4                    # f32 intermediates (wl/exp/store)
        + 4 * tm * C * 4                          # cluster-logit intermediates
    )


def _pick_tiles(B, C, Hp, Vp, in_isz, out_isz, budget, tm, tc):
    """Jointly pick (tm, tc, Ww buffer count) that fits the VMEM budget."""
    sublane = 8 * (4 // in_isz)
    if tm is not None:
        tms = [tm]
    else:
        tms = [t for t in (1024, 512, 256, 128, 64, 32, 16, 8)
               if t <= B and B % t == 0 and t % sublane == 0] or [B]
    if tc is not None:
        tcs = [tc]
    else:
        tcs = sorted({C} | {t for t in (2048, 1024, 512, 256, 128)
                            if t < C and C % t == 0}, reverse=True)
    fallback = None
    for tmc in tms:                       # prefer MXU M-fill (large tm) first
        for tcc in tcs:                   # then wider cluster tiles
            for bufs in (2, 1):           # then hidden DMA over single-buffering
                est = _estimate_vmem(tmc, tcc, Hp, C, Vp, in_isz, out_isz, bufs)
                if est <= budget:
                    return tmc, tcc, bufs, est
                if fallback is None or est < fallback[3]:
                    fallback = (tmc, tcc, bufs, est)
    return fallback                       # nothing fits: smallest footprint config


def _ww_block_spec(shape, index_map, buffers):
    """BlockSpec for the word-weight tile; single-buffer only when VMEM-tight."""
    if buffers is not None and buffers != 2:
        try:
            return pl.BlockSpec(shape, index_map,
                                pipeline_mode=pl.Buffered(buffers))
        except Exception:
            pass                          # older JAX: fall back to default buffering
    return pl.BlockSpec(shape, index_map)


# --------------------------------------------------------------------------- #
# Parameter preparation (one-time; hoisted out of the per-call path)
# --------------------------------------------------------------------------- #
class HSoftmaxParams(NamedTuple):
    wc: jax.Array          # (Hp, C)     matmul dtype, hidden zero-padded
    bc: jax.Array          # (1, C)      f32
    ww: jax.Array          # (Hp, C*Vp)  matmul dtype, (H, C, V)-major, V padded
    bw: jax.Array          # (C, Vp)     f32, -1e30 on padded columns
    hidden: int
    clusters: int
    vocab_per_cluster: int
    vocab_padded: int


def prepare_hierarchical_softmax_params(w_cluster, b_cluster, w_word, b_word, *,
                                        matmul_dtype=jnp.bfloat16, h_align=128):
    """Layout prep done ONCE: transpose (C,H,V)->(H,C*Vp), pad H/V, cast."""
    H, C = w_cluster.shape
    C2, H2, V = w_word.shape
    assert H == H2 and C == C2
    assert b_cluster.shape == (C,) and b_word.shape == (C, V)
    mm = jnp.dtype(matmul_dtype)
    Hp = _round_up(H, h_align)
    Vp = _round_up(V, 128)

    wc = jnp.zeros((Hp, C), mm).at[:H, :].set(w_cluster.astype(mm))
    bc = b_cluster.reshape(1, C).astype(jnp.float32)
    ww3 = jnp.zeros((Hp, C, Vp), mm).at[:H, :, :V].set(
        jnp.transpose(w_word, (1, 0, 2)).astype(mm))
    ww = ww3.reshape(Hp, C * Vp)
    bw = jnp.full((C, Vp), _NEG_BIG, jnp.float32).at[:, :V].set(
        b_word.astype(jnp.float32))
    return HSoftmaxParams(wc, bc, ww, bw, H, C, V, Vp)


# --------------------------------------------------------------------------- #
# Forward pass
# --------------------------------------------------------------------------- #
def hierarchical_softmax_prepared(x, params, *, tm=None, tc=None,
                                  out_dtype=jnp.float32, ww_buffers=None):
    """Returns flattened full-vocab log-probs of shape (B, C*V)."""
    B, H = x.shape
    Hp, C = params.wc.shape
    V, Vp = params.vocab_per_cluster, params.vocab_padded
    assert H == params.hidden
    mm = params.wc.dtype
    in_isz = jnp.dtype(mm).itemsize
    out_isz = jnp.dtype(out_dtype).itemsize
    sublane = 8 * (4 // in_isz)

    budget, phys = _vmem_budget()
    tm, tc, ww_bufs, est = _pick_tiles(B, C, Hp, Vp, in_isz, out_isz, budget,
                                       tm, tc)
    if ww_buffers is not None:
        ww_bufs = ww_buffers
        est = _estimate_vmem(tm, tc, Hp, C, Vp, in_isz, out_isz, ww_bufs)
    assert tm == B or (B % tm == 0 and tm % sublane == 0), (B, tm)
    assert tc == C or (C % tc == 0 and tc % 128 == 0), (C, tc)

    # Per-call activation prep only (weights were prepared once).
    if H == Hp:
        x_p = x.astype(mm)
    else:
        x_p = jnp.zeros((B, Hp), mm).at[:, :H].set(x.astype(mm))

    n_ct, n_bt = C // tc, B // tm
    grid = (n_ct, n_bt)            # batch innermost -> Ww tile stays VMEM-resident

    # Scoped-VMEM limit: generous vs. the conservative estimate but never above
    # physical VMEM minus headroom (v7x has only 64 MiB per core).
    vmem_limit = min(max(int(est * 1.4), 32 * _MIB), phys - 8 * _MIB)
    cparams = pltpu.CompilerParams(
        dimension_semantics=("parallel", "parallel"),
        vmem_limit_bytes=vmem_limit)

    cost = pl.CostEstimate(
        flops=int(2 * B * Hp * C * Vp + 2 * B * Hp * C + n_ct * 2 * B * Hp * C),
        transcendentals=int(B * C * Vp + n_ct * B * C),
        bytes_accessed=int(n_ct * B * Hp * in_isz + 2 * Hp * C * in_isz
                           + Hp * C * Vp * in_isz + C * (Vp + 1) * 4
                           + B * C * Vp * out_isz))

    out = pl.pallas_call(
        _hsoftmax_kernel,
        out_shape=jax.ShapeDtypeStruct((B, C, Vp), out_dtype),
        grid_spec=pltpu.PrefetchScalarGridSpec(
            num_scalar_prefetch=0,
            grid=grid,
            in_specs=[
                pl.BlockSpec((tm, Hp), lambda j, i: (i, 0)),        # x (streamed)
                pl.BlockSpec((Hp, C), lambda j, i: (0, 0)),         # Wc full (resident)
                pl.BlockSpec((1, C), lambda j, i: (0, 0)),          # bc full
                pl.BlockSpec((Hp, tc), lambda j, i: (0, j)),        # Wc tile columns
                pl.BlockSpec((1, tc), lambda j, i: (0, j)),         # bc tile
                _ww_block_spec((Hp, tc * Vp), lambda j, i: (0, j),  # Ww tile
                               ww_bufs),                            #  (resident / 1-buf)
                pl.BlockSpec((tc, Vp), lambda j, i: (j, 0)),        # bw tile
            ],
            out_specs=pl.BlockSpec((tm, tc, Vp), lambda j, i: (i, j, 0)),
        ),
        compiler_params=cparams,
        cost_estimate=cost,
    )(x_p, params.wc, params.bc, params.wc, params.bc, params.ww, params.bw)

    if Vp != V:
        out = out[:, :, :V]
    return out.reshape(B, C * V)


def hierarchical_softmax(x, w_cluster, b_cluster, w_word, b_word, *,
                         tm=None, tc=None, matmul_dtype=jnp.bfloat16,
                         out_dtype=jnp.float32):
    """One-shot convenience wrapper.  Repeated callers should call
    prepare_hierarchical_softmax_params() once and use the *_prepared path."""
    params = prepare_hierarchical_softmax_params(
        w_cluster, b_cluster, w_word, b_word, matmul_dtype=matmul_dtype)
    return hierarchical_softmax_prepared(x, params, tm=tm, tc=tc,
                                         out_dtype=out_dtype)


# --------------------------------------------------------------------------- #
# Reference + demo
# --------------------------------------------------------------------------- #
def _reference(x, w_cluster, b_cluster, w_word, b_word):
    cluster_logp = jax.nn.log_softmax(x @ w_cluster + b_cluster, axis=-1)
    word_logits = jnp.einsum('bh,chv->bcv', x, w_word) + b_word[None]
    word_logp = jax.nn.log_softmax(word_logits, axis=-1)
    out = cluster_logp[:, :, None] + word_logp
    return out.reshape(x.shape[0], -1)


if __name__ == "__main__":
    # ---- demo 1: tiny problem, single cluster tile, f32 output -------------
    B, H, C, V = 32, 32, 8, 128
    k = jax.random.split(jax.random.PRNGKey(0), 5)
    x = jax.random.normal(k[0], (B, H), dtype=jnp.float32)
    w_cluster = jax.random.normal(k[1], (H, C), dtype=jnp.float32) * 0.1
    b_cluster = jax.random.normal(k[2], (C,), dtype=jnp.float32) * 0.1
    w_word = jax.random.normal(k[3], (C, H, V), dtype=jnp.float32) * 0.1
    b_word = jax.random.normal(k[4], (C, V), dtype=jnp.float32) * 0.1

    # tm=16 forces a multi-step batch grid even at this tiny size so the
    # pipelined path (resident Ww, streamed x / out) is actually exercised.
    out = hierarchical_softmax(x, w_cluster, b_cluster, w_word, b_word, tm=16)
    out = jax.block_until_ready(out)
    ref = _reference(x, w_cluster, b_cluster, w_word, b_word)
    assert out.shape == (B, C * V)
    assert bool(jnp.allclose(jnp.sum(jnp.exp(out), axis=-1), 1.0, atol=1e-4))
    assert bool(jnp.allclose(out, ref, atol=5e-2, rtol=1e-2))

    # ---- demo 2: cluster-tiled grid (2x2), prepared params, bf16 output ----
    B2, H2, C2, V2 = 32, 64, 256, 128
    k2 = jax.random.split(jax.random.PRNGKey(1), 5)
    x2 = jax.random.normal(k2[0], (B2, H2), dtype=jnp.float32)
    wc2 = jax.random.normal(k2[1], (H2, C2), dtype=jnp.float32) * 0.1
    bc2 = jax.random.normal(k2[2], (C2,), dtype=jnp.float32) * 0.1
    ww2 = jax.random.normal(k2[3], (C2, H2, V2), dtype=jnp.float32) * 0.1
    bw2 = jax.random.normal(k2[4], (C2, V2), dtype=jnp.float32) * 0.1

    params2 = prepare_hierarchical_softmax_params(wc2, bc2, ww2, bw2)
    out2 = hierarchical_softmax_prepared(x2, params2, tm=16, tc=128,
                                         out_dtype=jnp.bfloat16)
    out2 = jax.block_until_ready(out2)
    ref2 = _reference(x2, wc2, bc2, ww2, bw2)
    assert out2.shape == (B2, C2 * V2) and out2.dtype == jnp.bfloat16
    o2 = out2.astype(jnp.float32)
    assert bool(jnp.allclose(jnp.sum(jnp.exp(o2), axis=-1), 1.0, atol=0.08))
    assert bool(jnp.allclose(o2, ref2, atol=0.2, rtol=0.05))

    print("KERNEL_OK")
</pallas_src>

<mosaic_0001>
module attributes {stable_mosaic.version = 11 : i64} {
  func.func @_hsoftmax_kernel(%arg0: i32, %arg1: i32, %arg2: memref<16x128xbf16, #tpu.memory_space<vmem>>, %arg3: memref<128x8xbf16, #tpu.memory_space<vmem>>, %arg4: memref<1x8xf32, #tpu.memory_space<vmem>>, %arg5: memref<128x8xbf16, #tpu.memory_space<vmem>>, %arg6: memref<1x8xf32, #tpu.memory_space<vmem>>, %arg7: memref<128x1024xbf16, #tpu.memory_space<vmem>>, %arg8: memref<8x128xf32, #tpu.memory_space<vmem>>, %arg9: memref<16x8x128xf32, #tpu.memory_space<vmem>>) attributes {dimension_semantics = [#tpu.dimension_semantics<parallel>, #tpu.dimension_semantics<parallel>], iteration_bounds = array<i64: 1, 2>, scalar_prefetch = 0 : i64, scratch_operands = 0 : i64, tpu.core_type = #tpu.core_type<tc>, window_params = [{transform_indices = @transform_0, window_bounds = array<i64: 16, 128>}, {pipeline_mode = #tpu.pipeline_mode<synchronous>, transform_indices = @transform_1, window_bounds = array<i64: 128, 8>}, {pipeline_mode = #tpu.pipeline_mode<synchronous>, transform_indices = @transform_2, window_bounds = array<i64: 1, 8>}, {transform_indices = @transform_3, window_bounds = array<i64: 128, 8>}, {transform_indices = @transform_4, window_bounds = array<i64: 1, 8>}, {transform_indices = @transform_5, window_bounds = array<i64: 128, 1024>}, {transform_indices = @transform_6, window_bounds = array<i64: 8, 128>}, {transform_indices = @transform_7, window_bounds = array<i64: 16, 8, 128>}]} {
    %c0 = arith.constant 0 : index
    %c0_0 = arith.constant 0 : index
    %0 = vector.load %arg2[%c0, %c0_0] : memref<16x128xbf16, #tpu.memory_space<vmem>>, vector<16x128xbf16>
    %c0_1 = arith.constant 0 : index
    %c0_2 = arith.constant 0 : index
    %1 = vector.load %arg3[%c0_1, %c0_2] : memref<128x8xbf16, #tpu.memory_space<vmem>>, vector<128x8xbf16>
    %cst = arith.constant dense<0.000000e+00> : vector<16x8xf32>
    %2 = tpu.matmul %0, %1, %cst {dimension_numbers = #tpu.dot_dimension_numbers<[1], [0], [0], [1], [0, 0, 1, 1], [], []>} : vector<16x128xbf16>, vector<128x8xbf16>, vector<16x8xf32> -> vector<16x8xf32>
    %c0_3 = arith.constant 0 : index
    %c0_4 = arith.constant 0 : index
    %3 = vector.load %arg4[%c0_3, %c0_4] : memref<1x8xf32, #tpu.memory_space<vmem>>, vector<1x8xf32>
    %4 = vector.broadcast %3 : vector<1x8xf32> to vector<16x8xf32>
    %5 = arith.addf %2, %4 : vector<16x8xf32>
    %cst_5 = arith.constant dense<0xFF800000> : vector<16xf32>
    %6 = vector.multi_reduction <maximumf>, %5, %cst_5 [1] : vector<16x8xf32> to vector<16xf32>
    %7 = vector.shape_cast %6 : vector<16xf32> to vector<16x1xf32>
    %8 = vector.broadcast %7 : vector<16x1xf32> to vector<16x8xf32>
    %9 = arith.subf %5, %8 : vector<16x8xf32>
    %10 = math.exp %9 : vector<16x8xf32>
    %cst_6 = arith.constant dense<0.000000e+00> : vector<16xf32>
    %11 = vector.multi_reduction <add>, %10, %cst_6 [1] : vector<16x8xf32> to vector<16xf32>
    %12 = vector.shape_cast %11 : vector<16xf32> to vector<16x1xf32>
    %13 = math.log %12 : vector<16x1xf32>
    %14 = arith.addf %7, %13 : vector<16x1xf32>
    %c0_7 = arith.constant 0 : index
    %c0_8 = arith.constant 0 : index
    %15 = vector.load %arg5[%c0_7, %c0_8] : memref<128x8xbf16, #tpu.memory_space<vmem>>, vector<128x8xbf16>
    %cst_9 = arith.constant dense<0.000000e+00> : vector<16x8xf32>
    %16 = tpu.matmul %0, %15, %cst_9 {dimension_numbers = #tpu.dot_dimension_numbers<[1], [0], [0], [1], [0, 0, 1, 1], [], []>} : vector<16x128xbf16>, vector<128x8xbf16>, vector<16x8xf32> -> vector<16x8xf32>
    %c0_10 = arith.constant 0 : index
    %c0_11 = arith.constant 0 : index
    %17 = vector.load %arg6[%c0_10, %c0_11] : memref<1x8xf32, #tpu.memory_space<vmem>>, vector<1x8xf32>
    %18 = vector.broadcast %17 : vector<1x8xf32> to vector<16x8xf32>
    %19 = arith.addf %16, %18 : vector<16x8xf32>
    %20 = vector.broadcast %14 : vector<16x1xf32> to vector<16x8xf32>
    %21 = arith.subf %19, %20 : vector<16x8xf32>
    %c0_12 = arith.constant 0 : index
    %c0_13 = arith.constant 0 : index
    %22 = vector.load %arg7[%c0_12, %c0_13] : memref<128x1024xbf16, #tpu.memory_space<vmem>>, vector<128x1024xbf16>
    %cst_14 = arith.constant dense<0.000000e+00> : vector<16x1024xf32>
    %23 = tpu.matmul %0, %22, %cst_14 {dimension_numbers = #tpu.dot_dimension_numbers<[1], [0], [0], [1], [0, 0, 1, 1], [], []>} : vector<16x128xbf16>, vector<128x1024xbf16>, vector<16x1024xf32> -> vector<16x1024xf32>
    %24 = vector.shape_cast %23 : vector<16x1024xf32> to vector<16x8x128xf32>
    %c0_15 = arith.constant 0 : index
    %c0_16 = arith.constant 0 : index
    %25 = vector.load %arg8[%c0_15, %c0_16] : memref<8x128xf32, #tpu.memory_space<vmem>>, vector<8x128xf32>
    %26 = vector.shape_cast %25 : vector<8x128xf32> to vector<1x8x128xf32>
    %27 = vector.broadcast %26 : vector<1x8x128xf32> to vector<16x8x128xf32>
    %28 = arith.addf %24, %27 : vector<16x8x128xf32>
    %cst_17 = arith.constant dense<0xFF800000> : vector<16x8xf32>
    %29 = vector.multi_reduction <maximumf>, %28, %cst_17 [2] : vector<16x8x128xf32> to vector<16x8xf32>
    %30 = vector.shape_cast %29 : vector<16x8xf32> to vector<16x8x1xf32>
    %31 = vector.broadcast %30 : vector<16x8x1xf32> to vector<16x8x128xf32>
    %32 = arith.subf %28, %31 : vector<16x8x128xf32>
    %33 = math.exp %32 : vector<16x8x128xf32>
    %cst_18 = arith.constant dense<0.000000e+00> : vector<16x8xf32>
    %34 = vector.multi_reduction <add>, %33, %cst_18 [2] : vector<16x8x128xf32> to vector<16x8xf32>
    %35 = vector.shape_cast %34 : vector<16x8xf32> to vector<16x8x1xf32>
    %36 = math.log %35 : vector<16x8x1xf32>
    %37 = arith.addf %30, %36 : vector<16x8x1xf32>
    %38 = vector.shape_cast %21 : vector<16x8xf32> to vector<16x8x1xf32>
    %39 = arith.subf %38, %37 : vector<16x8x1xf32>
    %40 = vector.broadcast %39 : vector<16x8x1xf32> to vector<16x8x128xf32>
    %41 = arith.addf %28, %40 : vector<16x8x128xf32>
    %c0_19 = arith.constant 0 : index
    %c0_20 = arith.constant 0 : index
    %c0_21 = arith.constant 0 : index
    %42 = vector.load %arg9[%c0_19, %c0_20, %c0_21] : memref<16x8x128xf32, #tpu.memory_space<vmem>>, vector<16x8x128xf32>
    tpu.vector_store %arg9[%c0_19, %c0_20, %c0_21], %41 {strides = array<i32>} : memref<16x8x128xf32, #tpu.memory_space<vmem>>, vector<16x8x128xf32>,
    return
  }
  func.func @transform_0(%arg0: i32, %arg1: i32) -> (i32, i32) {
    %c0_i32 = arith.constant 0 : i32
    %c0_i32_0 = arith.constant 0 : i32
    return %arg1, %c0_i32 : i32, i32
  }
  func.func @transform_1(%arg0: i32, %arg1: i32) -> (i32, i32) {
    %c0_i32 = arith.constant 0 : i32
    %c0_i32_0 = arith.constant 0 : i32
    %c0_i32_1 = arith.constant 0 : i32
    return %c0_i32, %c0_i32_0 : i32, i32
  }
  func.func @transform_2(%arg0: i32, %arg1: i32) -> (i32, i32) {
    %c0_i32 = arith.constant 0 : i32
    %c0_i32_0 = arith.constant 0 : i32
    %c0_i32_1 = arith.constant 0 : i32
    return %c0_i32, %c0_i32_0 : i32, i32
  }
  func.func @transform_3(%arg0: i32, %arg1: i32) -> (i32, i32) {
    %c0_i32 = arith.constant 0 : i32
    %c0_i32_0 = arith.constant 0 : i32
    return %c0_i32, %arg0 : i32, i32
  }
  func.func @transform_4(%arg0: i32, %arg1: i32) -> (i32, i32) {
    %c0_i32 = arith.constant 0 : i32
    %c0_i32_0 = arith.constant 0 : i32
    return %c0_i32, %arg0 : i32, i32
  }
  func.func @transform_5(%arg0: i32, %arg1: i32) -> (i32, i32) {
    %c0_i32 = arith.constant 0 : i32
    %c0_i32_0 = arith.constant 0 : i32
    return %c0_i32, %arg0 : i32, i32
  }
  func.func @transform_6(%arg0: i32, %arg1: i32) -> (i32, i32) {
    %c0_i32 = arith.constant 0 : i32
    %c0_i32_0 = arith.constant 0 : i32
    return %arg0, %c0_i32 : i32, i32
  }
  func.func @transform_7(%arg0: i32, %arg1: i32) -> (i32, i32, i32) {
    %c0_i32 = arith.constant 0 : i32
    %c0_i32_0 = arith.constant 0 : i32
    return %arg1, %arg0, %c0_i32 : i32, i32, i32
  }
}

</mosaic_0001>

<llo_original>
// kernel: tpu_custom_call.1
$region0: #{tpu_custom_call.1}
  #allocation0 [shape = 'u32[]', space=smem, size = 0x4, offset = 0x4, fixed_abs, tag = 'smem constant byte address 0x4 - core index']
  #allocation1 [shape = 'u32[144,128]{1,0:T(1,128)}', space=vmem, size = 0x12000, scoped, tag = 'internal scratch']
  %s0 = inlined_call_operand.vmem [shape: bf16[32,128], index: 0, kind: input, shape index: {}]
  %s1 = inlined_call_operand.vmem [shape: bf16[128,8], index: 1, kind: input, shape index: {}]
  %s2 = inlined_call_operand.vmem [shape: f32[1,8], index: 2, kind: input, shape index: {}]
  %s3 = inlined_call_operand.vmem [shape: bf16[128,8], index: 3, kind: input, shape index: {}]
  %s4 = inlined_call_operand.vmem [shape: f32[1,8], index: 4, kind: input, shape index: {}]
  %s5 = inlined_call_operand.hbm [shape: bf16[128,1024], index: 5, kind: input, shape index: {}]
  %s6 = inlined_call_operand.vmem [shape: f32[8,128], index: 6, kind: input, shape index: {}]
  %s7 = inlined_call_operand.hbm [shape: f32[32,8,128], index: 7, kind: output, shape index: {}]
  %s8 = sld [smem:[#allocation0]]
  $region65: #{tpu_custom_call.1} parent=0
    _
  %s10 = ssub.s32 1, %s8
  %s11 = scalar_select 0, %s10, %s8
  $region1: #{tpu_custom_call.1} parent=0
    #allocation2 [shape = 'u8[262144]{0}', space=vmem, size = 0x40000, scoped, tag = 'input window, operand 5, single buffered']
    #allocation3 [shape = 's32[2]{0}', space=sflag, size = 0x8, scoped, tag = 'scoped memory for tpu_custom_call.1']
    #allocation4 [shape = 's32[2]{0}', space=sflag, size = 0x8, scoped, tag = 'scoped memory for tpu_custom_call.1']
    #allocation5 [shape = 'u8[131072]{0}', space=vmem, size = 0x20000, scoped, tag = 'output window, operand 0']
    %12 = vsyncpa [#allocation3], 0
    %13 = vsyncpa [#allocation4], 0
    %s14 = scalar_lea.sflag [#allocation4], 1
    %15 = vsyncpa %s14, 0
    loop: start=0, step=1, limit=4
    $region2: #{tpu_custom_call.1} parent=1 // loop_pre_header
      _
    $region3: #{tpu_custom_call.1} parent=1 // loop_header
      %s17 = sphi 0, %s21
      %p18 = scmp.ge.s32.totalorder %s17, 4
      %s24 = sphi 0, %s36
      %s25 = sphi 0, %s32
      %s26 = sphi 0, %s24
      %s27 = sphi 0, %s25
      %s28 = sphi 0, %s26
      %s29 = sphi 0, %s27
      %s39 = sphi 0, %s41
      %s42 = sphi 0, %s39
      %s43 = sphi 0, %s42
      %s59 = sphi 0, %s43
      %s63 = sphi 0, %s63
      %s65 = sphi 0, %s63
      %s66 = sphi 0, %s65
      %s80 = sphi 0, %s66
      %s84 = sphi 0, %s84
      %s86 = sphi 0, %s84
      %s87 = sphi 0, %s86
      %s101 = sphi 0, %s87
      %s107 = sphi 0, %s109
      %s110 = sphi 0, %s107
      %s111 = sphi 0, %s110
      %s127 = sphi 0, %s111
      %s133 = sphi 0, %s135
      %s136 = sphi 0, %s133
      %s137 = sphi 0, %s136
      %s153 = sphi 0, %s137
      %s159 = sphi 0, %s161
      %s162 = sphi 0, %s159
      %s163 = sphi 0, %s162
      %s179 = sphi 0, %s163
      %s185 = sphi 0, %s187
      %s188 = sphi 0, %s185
      %s189 = sphi 0, %s188
      %s205 = sphi 0, %s189
      %s213 = sphi 0, %s215
      %s216 = sphi 0, %s213
      %s217 = sphi 0, %s216
      %s233 = sphi 0, %s217
    $region4: #{tpu_custom_call.1} parent=1 // loop_header_branch
      %20 = sbr.rel (%p18) target = $region8
    $region5: #{tpu_custom_call.1} parent=1 // loop_body
      %s22 = ssub.s32 %s17, 1
      %s23 = ssub.s32 %s17, 2
      %s30 = sadd.s32 1, %s25
      %p31 = scmp.ge.s32.totalorder %s30, 2
      %s32 = scalar_select %p31, 0, %s30
      %s33 = sadd.s32 1, %s24
      %s34 = scalar_select %p31, %s33, %s24
      %p35 = scmp.ge.s32.totalorder %s34, 1
      %s36 = scalar_select %p35, 0, %s34
      %s37 = ssub.s32 %s25, %s32
      %p38 = scmp.eq.s32.totalorder %s37, 0
      %s40 = sadd.s32 %s39, 1
      %s41 = scalar_select %p38, %s39, %s40
      %p44 = pneg %p38
      %p45 = scmp.eq.s32.totalorder %s17, 1
      %p46 = por %p44, %p45
      %p47 = scmp.ne.s32.totalorder %s39, %s42
      %p48 = scmp.eq.s32.totalorder %s17, 0
      %p49 = por %p47, %p48
      %p50 = scmp.ne.s32.totalorder %s39, %s42
      %p51 = scmp.eq.s32.totalorder %s22, 1
      %p52 = por %p50, %p51
      %p53 = scmp.ne.s32.totalorder %s42, %s43
      %p54 = scmp.eq.s32.totalorder %s22, 0
      %p55 = por %p53, %p54
      %p56 = scmp.ne.s32.totalorder %s42, %s43
      %p57 = scmp.eq.s32.totalorder %s23, 1
      %p58 = por %p56, %p57
      %p60 = scmp.ne.s32.totalorder %s43, %s59
      %p61 = scmp.eq.s32.totalorder %s23, 0
      %p62 = por %p60, %p61
      %s64 = sadd.s32 %s63, 1
      %p67 = scmp.eq.s32.totalorder %s17, 1
      %p68 = scmp.ne.s32.totalorder %s63, %s65
      %p69 = scmp.eq.s32.totalorder %s17, 0
      %p70 = por %p68, %p69
      %p71 = scmp.ne.s32.totalorder %s63, %s65
      %p72 = scmp.eq.s32.totalorder %s22, 1
      %p73 = por %p71, %p72
      %p74 = scmp.ne.s32.totalorder %s65, %s66
      %p75 = scmp.eq.s32.totalorder %s22, 0
      %p76 = por %p74, %p75
      %p77 = scmp.ne.s32.totalorder %s65, %s66
      %p78 = scmp.eq.s32.totalorder %s23, 1
      %p79 = por %p77, %p78
      %p81 = scmp.ne.s32.totalorder %s66, %s80
      %p82 = scmp.eq.s32.totalorder %s23, 0
      %p83 = por %p81, %p82
      %s85 = sadd.s32 %s84, 1
      %p88 = scmp.eq.s32.totalorder %s17, 1
      %p89 = scmp.ne.s32.totalorder %s84, %s86
      %p90 = scmp.eq.s32.totalorder %s17, 0
      %p91 = por %p89, %p90
      %p92 = scmp.ne.s32.totalorder %s84, %s86
      %p93 = scmp.eq.s32.totalorder %s22, 1
      %p94 = por %p92, %p93
      %p95 = scmp.ne.s32.totalorder %s86, %s87
      %p96 = scmp.eq.s32.totalorder %s22, 0
      %p97 = por %p95, %p96
      %p98 = scmp.ne.s32.totalorder %s86, %s87
      %p99 = scmp.eq.s32.totalorder %s23, 1
      %p100 = por %p98, %p99
      %p102 = scmp.ne.s32.totalorder %s87, %s101
      %p103 = scmp.eq.s32.totalorder %s23, 0
      %p104 = por %p102, %p103
      %s105 = ssub.s32 %s24, %s36
      %p106 = scmp.eq.s32.totalorder %s105, 0
      %s108 = sadd.s32 %s107, 1
      %s109 = scalar_select %p106, %s107, %s108
      %p112 = pneg %p106
      %p113 = scmp.eq.s32.totalorder %s17, 1
      %p114 = por %p112, %p113
      %p115 = scmp.ne.s32.totalorder %s107, %s110
      %p116 = scmp.eq.s32.totalorder %s17, 0
      %p117 = por %p115, %p116
      %p118 = scmp.ne.s32.totalorder %s107, %s110
      %p119 = scmp.eq.s32.totalorder %s22, 1
      %p120 = por %p118, %p119
      %p121 = scmp.ne.s32.totalorder %s110, %s111
      %p122 = scmp.eq.s32.totalorder %s22, 0
      %p123 = por %p121, %p122
      %p124 = scmp.ne.s32.totalorder %s110, %s111
      %p125 = scmp.eq.s32.totalorder %s23, 1
      %p126 = por %p124, %p125
      %p128 = scmp.ne.s32.totalorder %s111, %s127
      %p129 = scmp.eq.s32.totalorder %s23, 0
      %p130 = por %p128, %p129
      %s131 = ssub.s32 %s24, %s36
      %p132 = scmp.eq.s32.totalorder %s131, 0
      %s134 = sadd.s32 %s133, 1
      %s135 = scalar_select %p132, %s133, %s134
      %p138 = pneg %p132
      %p139 = scmp.eq.s32.totalorder %s17, 1
      %p140 = por %p138, %p139
      %p141 = scmp.ne.s32.totalorder %s133, %s136
      %p142 = scmp.eq.s32.totalorder %s17, 0
      %p143 = por %p141, %p142
      %p144 = scmp.ne.s32.totalorder %s133, %s136
      %p145 = scmp.eq.s32.totalorder %s22, 1
      %p146 = por %p144, %p145
      %p147 = scmp.ne.s32.totalorder %s136, %s137
      %p148 = scmp.eq.s32.totalorder %s22, 0
      %p149 = por %p147, %p148
      %p150 = scmp.ne.s32.totalorder %s136, %s137
      %p151 = scmp.eq.s32.totalorder %s23, 1
      %p152 = por %p150, %p151
      %p154 = scmp.ne.s32.totalorder %s137, %s153
      %p155 = scmp.eq.s32.totalorder %s23, 0
      %p156 = por %p154, %p155
      %s157 = ssub.s32 %s24, %s36
      %p158 = scmp.eq.s32.totalorder %s157, 0
      %s160 = sadd.s32 %s159, 1
      %s161 = scalar_select %p158, %s159, %s160
      %p164 = pneg %p158
      %p165 = scmp.eq.s32.totalorder %s17, 1
      %p166 = por %p164, %p165
      %p167 = scmp.ne.s32.totalorder %s159, %s162
      %p168 = scmp.eq.s32.totalorder %s17, 0
      %p169 = por %p167, %p168
      %p170 = scmp.ne.s32.totalorder %s159, %s162
      %p171 = scmp.eq.s32.totalorder %s22, 1
      %p172 = por %p170, %p171
      %p173 = scmp.ne.s32.totalorder %s162, %s163
      %p174 = scmp.eq.s32.totalorder %s22, 0
      %p175 = por %p173, %p174
      %p176 = scmp.ne.s32.totalorder %s162, %s163
      %p177 = scmp.eq.s32.totalorder %s23, 1
      %p178 = por %p176, %p177
      %p180 = scmp.ne.s32.totalorder %s163, %s179
      %p181 = scmp.eq.s32.totalorder %s23, 0
      %p182 = por %p180, %p181
      %s183 = ssub.s32 %s24, %s36
      %p184 = scmp.eq.s32.totalorder %s183, 0
      %s186 = sadd.s32 %s185, 1
      %s187 = scalar_select %p184, %s185, %s186
      %p190 = pneg %p184
      %p191 = scmp.eq.s32.totalorder %s17, 1
      %p192 = por %p190, %p191
      %p193 = scmp.ne.s32.totalorder %s185, %s188
      %p194 = scmp.eq.s32.totalorder %s17, 0
      %p195 = por %p193, %p194
      %p196 = scmp.ne.s32.totalorder %s185, %s188
      %p197 = scmp.eq.s32.totalorder %s22, 1
      %p198 = por %p196, %p197
      %p199 = scmp.ne.s32.totalorder %s188, %s189
      %p200 = scmp.eq.s32.totalorder %s22, 0
      %p201 = por %p199, %p200
      %p202 = scmp.ne.s32.totalorder %s188, %s189
      %p203 = scmp.eq.s32.totalorder %s23, 1
      %p204 = por %p202, %p203
      %p206 = scmp.ne.s32.totalorder %s189, %s205
      %p207 = scmp.eq.s32.totalorder %s23, 0
      %p208 = por %p206, %p207
      %s209 = ssub.s32 %s25, %s32
      %s210 = ssub.s32 %s24, %s36
      %s211 = sor.u32 %s209, %s210
      %p212 = scmp.eq.s32.totalorder %s211, 0
      %s214 = sadd.s32 %s213, 1
      %s215 = scalar_select %p212, %s213, %s214
      %p218 = pneg %p212
      %p219 = scmp.eq.s32.totalorder %s17, 1
      %p220 = por %p218, %p219
      %p221 = scmp.ne.s32.totalorder %s213, %s216
      %p222 = scmp.eq.s32.totalorder %s17, 0
      %p223 = por %p221, %p222
      %p224 = scmp.ne.s32.totalorder %s213, %s216
      %p225 = scmp.eq.s32.totalorder %s22, 1
      %p226 = por %p224, %p225
      %p227 = scmp.ne.s32.totalorder %s216, %s217
      %p228 = scmp.eq.s32.totalorder %s22, 0
      %p229 = por %p227, %p228
      %p230 = scmp.ne.s32.totalorder %s216, %s217
      %p231 = scmp.eq.s32.totalorder %s23, 1
      %p232 = por %p230, %p231
      %p234 = scmp.ne.s32.totalorder %s217, %s233
      %p235 = scmp.eq.s32.totalorder %s23, 0
      %p236 = por %p234, %p235
      %p237 = scmp.le.s32.totalorder 1, %s17
      %p238 = scmp.lt.s32.totalorder %s17, 3
      %p239 = pnand %p237, %p238
      %p240 = pneg %p239
      // Predicated region
      $region9: #{tpu_custom_call.1} parent=5 // pred_check
        _
      $region10: #{tpu_custom_call.1} parent=5 // pred_check_branch
        %242 = sbr.rel (%p239) target = $region12
      $region11: #{tpu_custom_call.1} parent=5 // pred_region
        %s243 = ssub.s32 %s17, 1
        // Predicated region
        $region13: #{tpu_custom_call.1} parent=11 // pred_check
          %p244 = pneg %p76
        $region14: #{tpu_custom_call.1} parent=11 // pred_check_branch
          %246 = sbr.rel (%p244) target = $region16
        $region15: #{tpu_custom_call.1} parent=11 // pred_region
          _
        $region16: #{tpu_custom_call.1} parent=11 // pred_fallthru
          _
        // Predicated region
        $region17: #{tpu_custom_call.1} parent=11 // pred_check
          %p247 = pneg %p97
        $region18: #{tpu_custom_call.1} parent=11 // pred_check_branch
          %249 = sbr.rel (%p247) target = $region20
        $region19: #{tpu_custom_call.1} parent=11 // pred_region
          _
        $region20: #{tpu_custom_call.1} parent=11 // pred_fallthru
          _
        // Predicated region
        $region21: #{tpu_custom_call.1} parent=11 // pred_check
          %p250 = pneg %p123
        $region22: #{tpu_custom_call.1} parent=11 // pred_check_branch
          %252 = sbr.rel (%p250) target = $region24
        $region23: #{tpu_custom_call.1} parent=11 // pred_region
          %p253 = scmp.lt.s32.totalorder %s26, 0
          %s254 = scalar_select %p253, %s26, 0
          %s255 = smul.addr %s254, 4
          %s256 = scalar_lea.vmem %s3, %s255
        $region24: #{tpu_custom_call.1} parent=11 // pred_fallthru
          _
        // Predicated region
        $region25: #{tpu_custom_call.1} parent=11 // pred_check
          %p257 = pneg %p149
        $region26: #{tpu_custom_call.1} parent=11 // pred_check_branch
          %259 = sbr.rel (%p257) target = $region28
        $region27: #{tpu_custom_call.1} parent=11 // pred_region
          %p260 = scmp.lt.s32.totalorder %s26, 0
          %s261 = scalar_select %p260, %s26, 0
          %s262 = scalar_lea.vmem %s4, %s261
        $region28: #{tpu_custom_call.1} parent=11 // pred_fallthru
          _
        // Predicated region
        $region29: #{tpu_custom_call.1} parent=11 // pred_check
          %p263 = pneg %p175
        $region30: #{tpu_custom_call.1} parent=11 // pred_check_branch
          %265 = sbr.rel (%p263) target = $region32
        $region31: #{tpu_custom_call.1} parent=11 // pred_region
          %s266 = smul.u32 8, %s26
          %s268 = ssub.s32 8192, 8192
          %269 = vsyncadd [#allocation3], %s268
          %s270 = smul.addr %s266, 64
          %s271 = scalar_lea.hbm %s5, %s270
          %s272 = sshll.u32 [#allocation2], 4
          %s273 = int_to_ptr.vmem [resolvable:$true] %s272
          %278 = dma.hbm_to_vmem [thread:$0]  %s271, 8192, %s273, [#allocation3], 512, 512, 32
        $region32: #{tpu_custom_call.1} parent=11 // pred_fallthru
          _
        // Predicated region
        $region33: #{tpu_custom_call.1} parent=11 // pred_check
          %p279 = pneg %p201
        $region34: #{tpu_custom_call.1} parent=11 // pred_check_branch
          %281 = sbr.rel (%p279) target = $region36
        $region35: #{tpu_custom_call.1} parent=11 // pred_region
          %p282 = scmp.lt.s32.totalorder %s26, 0
          %s283 = scalar_select %p282, %s26, 0
          %s284 = smul.addr %s283, 8
          %s285 = scalar_lea.vmem %s6, %s284
        $region36: #{tpu_custom_call.1} parent=11 // pred_fallthru
          _
      $region12: #{tpu_custom_call.1} parent=5 // pred_fallthru
        _
      %p286 = scmp.lt.s32.totalorder %s17, 2
      // Predicated region
      $region37: #{tpu_custom_call.1} parent=5 // pred_check
        %p287 = pneg %p286
      $region38: #{tpu_custom_call.1} parent=5 // pred_check_branch
        %289 = sbr.rel (%p287) target = $region40
      $region39: #{tpu_custom_call.1} parent=5 // pred_region
        // Predicated region
        $region41: #{tpu_custom_call.1} parent=39 // pred_check
          %p290 = pneg %p49
        $region42: #{tpu_custom_call.1} parent=39 // pred_check_branch
          %292 = sbr.rel (%p290) target = $region44
        $region43: #{tpu_custom_call.1} parent=39 // pred_region
          %s293 = smul.u32 2, %s25
          %p294 = scmp.lt.s32.totalorder %s293, 3
          %s295 = scalar_select %p294, %s293, 3
          %s296 = smul.addr %s295, 4
          %s297 = scalar_lea.vmem %s0, %s296
          %s298 = smul.u32 2, %s25
        $region44: #{tpu_custom_call.1} parent=39 // pred_fallthru
          _
      $region40: #{tpu_custom_call.1} parent=5 // pred_fallthru
        _
      %p299 = scmp.le.s32.totalorder 1, %s17
      %p300 = scmp.lt.s32.totalorder %s17, 3
      %p301 = pnand %p299, %p300
      %p302 = pneg %p301
      // Predicated region
      $region45: #{tpu_custom_call.1} parent=5 // pred_check
        _
      $region46: #{tpu_custom_call.1} parent=5 // pred_check_branch
        %304 = sbr.rel (%p301) target = $region48
      $region47: #{tpu_custom_call.1} parent=5 // pred_region
        %s305 = ssub.s32 %s17, 1
        // Predicated region
        $region49: #{tpu_custom_call.1} parent=47 // pred_check
          %p306 = pneg %p175
        $region50: #{tpu_custom_call.1} parent=47 // pred_check_branch
          %308 = sbr.rel (%p306) target = $region52
        $region51: #{tpu_custom_call.1} parent=47 // pred_region
          %309 = dma.done [#allocation3], 8192
        $region52: #{tpu_custom_call.1} parent=47 // pred_fallthru
          _
        %s310 = smul.u32 2, %s27
        %p311 = scmp.lt.s32.totalorder %s310, 3
        %s312 = scalar_select %p311, %s310, 3
        %s313 = smul.addr %s312, 4
        %s314 = scalar_lea.vmem %s0, %s313
        %p315 = pneg %p55
        %p316 = pneg %p52
        %p317 = pneg %p76
        %p318 = pneg %p73
        %p319 = pneg %p97
        %p320 = pneg %p94
        %p321 = scmp.lt.s32.totalorder %s26, 0
        %s322 = scalar_select %p321, %s26, 0
        %s323 = smul.addr %s322, 4
        %s324 = scalar_lea.vmem %s3, %s323
        %p325 = pneg %p123
        %p326 = pneg %p120
        %p327 = scmp.lt.s32.totalorder %s26, 0
        %s328 = scalar_select %p327, %s26, 0
        %s329 = scalar_lea.vmem %s4, %s328
        %p330 = pneg %p149
        %p331 = pneg %p146
        %p332 = pneg %p175
        %p333 = pneg %p172
        %p334 = scmp.lt.s32.totalorder %s26, 0
        %s335 = scalar_select %p334, %s26, 0
        %s336 = smul.addr %s335, 8
        %s337 = scalar_lea.vmem %s6, %s336
        %p338 = pneg %p201
        %p339 = pneg %p198
        %p340 = pneg %p229
        %p341 = pneg %p226
        %s342 = sand.u32 %s216, 1
        %s343 = scalar_lea.sflag [#allocation4], %s342
        %s344 = sand.u32 %s216, 1
        %s345 = smul.addr %s344, 128
        %s346 = scalar_lea.vmem [#allocation5], %s345
        %s347 = smul.u32 2, %s27
        %p348 = scmp.lt.s32.totalorder %s347, 3
        %s349 = scalar_select %p348, %s347, 3
        %s350 = smul.addr %s349, 4
        %s351 = scalar_lea.vmem %s0, %s350
        %s352 = smul.u32 2, %s27
        %p353 = scmp.lt.s32.totalorder %s26, 0
        %s354 = scalar_select %p353, %s26, 0
        %s355 = smul.addr %s354, 4
        %s356 = scalar_lea.vmem %s3, %s355
        %p357 = scmp.lt.s32.totalorder %s26, 0
        %s358 = scalar_select %p357, %s26, 0
        %s359 = scalar_lea.vmem %s4, %s358
        %s360 = smul.u32 8, %s26
        %p361 = scmp.lt.s32.totalorder %s26, 0
        %s362 = scalar_select %p361, %s26, 0
        %s363 = smul.addr %s362, 8
        %s364 = scalar_lea.vmem %s6, %s363
        %s365 = smul.u32 16, %s27
        %v367 = vld [vmem:[%s351] sm:$0xf]
        %v368 = vld [vmem:[%s351 + $0x4] sm:$0xf]
        %v369 = vld [vmem:[%s1] sm:$0xf]
        %v370 = vld [vmem:[%s1 + $0x4] sm:$0xf]
        %v371 = vld [vmem:[%s1 + $0x8] sm:$0xf]
        %v372 = vld [vmem:[%s1 + $0xc] sm:$0xf]
        %v373 = vld [vmem:[%s1 + $0x10] sm:$0xf]
        %v374 = vld [vmem:[%s1 + $0x14] sm:$0xf]
        %v375 = vld [vmem:[%s1 + $0x18] sm:$0xf]
        %v376 = vld [vmem:[%s1 + $0x1c] sm:$0xf]
        %v377 = vld [vmem:[%s1 + $0x20] sm:$0xf]
        %v378 = vld [vmem:[%s1 + $0x24] sm:$0xf]
        %v379 = vld [vmem:[%s1 + $0x28] sm:$0xf]
        %v380 = vld [vmem:[%s1 + $0x2c] sm:$0xf]
        %v381 = vld [vmem:[%s1 + $0x30] sm:$0xf]
        %v382 = vld [vmem:[%s1 + $0x34] sm:$0xf]
        %v383 = vld [vmem:[%s1 + $0x38] sm:$0xf]
        %v384 = vld [vmem:[%s1 + $0x3c] sm:$0xf]
        %v385 = vld [vmem:[%s2] sm:$0x1]
        %v387 = vlaneseq
        %v388 = vshrl.u32 %v387, 7
        %v389 = vsub.s32 0, %v388
        %v390 = vrot.slane %v385, %v389
        %v394 = vunpack.c.l.b16 %v367
        %v395 = vunpack.c.l.b16 %v368
        %v396 = vpack.c.b16 %v395, %v394
        %v414 = vunpack.c.l.b16 %v369
        %v415 = vunpack.c.l.b16 %v370
        %v416 = vunpack.c.l.b16 %v371
        %v417 = vunpack.c.l.b16 %v372
        %v418 = vunpack.c.l.b16 %v373
        %v419 = vunpack.c.l.b16 %v374
        %v420 = vunpack.c.l.b16 %v375
        %v421 = vunpack.c.l.b16 %v376
        %v422 = vunpack.c.l.b16 %v377
        %v423 = vunpack.c.l.b16 %v378
        %v424 = vunpack.c.l.b16 %v379
        %v425 = vunpack.c.l.b16 %v380
        %v426 = vunpack.c.l.b16 %v381
        %v427 = vunpack.c.l.b16 %v382
        %v428 = vunpack.c.l.b16 %v383
        %v429 = vunpack.c.l.b16 %v384
        %v430 = vpack.c.b16 %v415, %v414
        %v431 = vpack.c.b16 %v417, %v416
        %v432 = vpack.c.b16 %v419, %v418
        %v433 = vpack.c.b16 %v421, %v420
        %v434 = vpack.c.b16 %v423, %v422
        %v435 = vpack.c.b16 %v425, %v424
        %v436 = vpack.c.b16 %v427, %v426
        %v437 = vpack.c.b16 %v429, %v428
        %446 = vmatprep.subr.bf16.mxu0 0
        %447 = vmatpush1.bf16.msra.mxu0 %v430
        %448 = vmatprep.subr.bf16.mxu0 0
        %449 = vmatpush1.bf16.msra.mxu0 %v431
        %450 = vmatprep.subr.bf16.mxu0 0
        %451 = vmatpush1.bf16.msra.mxu0 %v432
        %452 = vmatprep.subr.bf16.mxu0 0
        %453 = vmatpush1.bf16.msra.mxu0 %v433
        %454 = vmatprep.subr.bf16.mxu0 0
        %455 = vmatpush1.bf16.msra.mxu0 %v434
        %456 = vmatprep.subr.bf16.mxu0 0
        %457 = vmatpush1.bf16.msra.mxu0 %v435
        %458 = vmatprep.subr.bf16.mxu0 0
        %459 = vmatpush1.bf16.msra.mxu0 %v436
        %460 = vmatprep.subr.bf16.mxu0 0
        %461 = vmatpush1.bf16.msra.mxu0 %v437
        %462 = vmatprep.subr.bf16.mxu0 0
        %463 = vmatpush1.bf16.msra.mxu0 0
        %464 = vmatprep.subr.bf16.mxu0 0
        %465 = vmatpush1.bf16.msra.mxu0 0
        %466 = vmatprep.subr.bf16.mxu0 0
        %467 = vmatpush1.bf16.msra.mxu0 0
        %468 = vmatprep.subr.bf16.mxu0 0
        %469 = vmatpush1.bf16.msra.mxu0 0
        %470 = vmatprep.subr.bf16.mxu0 0
        %471 = vmatpush1.bf16.msra.mxu0 0
        %472 = vmatprep.subr.bf16.mxu0 0
        %473 = vmatpush1.bf16.msra.mxu0 0
        %474 = vmatprep.subr.bf16.mxu0 0
        %475 = vmatpush1.bf16.msra.mxu0 0
        %476 = vmatprep.subr.bf16.mxu0 0
        %477 = vmatpush1.bf16.msra.mxu0 0
        %478 = vmatprep.mubr.bf16.mxu0 0
        %479 = vmatmul.mubr.bf16.gmra.mrb[0].mxu0 %v396
        %v480 = vpop.f32.mrb[0].mxu0
        %v481 = vadd.f32 %v390, %v480
        %v482 = vpop.f32.mrb[0].mxu0
        %v483 = vpop.f32.mrb[0].mxu0
        %v484 = vadd.f32 %v390, %v483
        %v485 = vpop.f32.mrb[0].mxu0
        %486 = vdwg.mxu0
        %vm487 = vcmask 64512
        %v488 = vsel %vm487, %v481, -inf
        %489 = vmax.xlane.f32.xlu0 %v488
        %v490 = vpop.xlane.xlu0 %489
        %v491 = vsel %vm487, %v484, -inf
        %492 = vmax.xlane.f32.xlu0 %v491
        %v493 = vpop.xlane.xlu0 %492
        %v494 = vsub.f32 %v481, %v490
        %v495 = vsub.f32 %v484, %v493
        %v496 = vmul.f32 %v494, 1.442695
        %v497 = vpow.pop %v496
        %v498 = vmul.f32 %v495, 1.442695
        %v499 = vpow.pop %v498
        %v500 = vsel %vm487, %v497, 0.0
        %501 = vadd.xlane.f32.xlu0 %v500
        %v502 = vpop.xlane.xlu0 %501
        %v503 = vsel %vm487, %v499, 0.0
        %504 = vadd.xlane.f32.xlu0 %v503
        %v505 = vpop.xlane.xlu0 %504
        %v506 = vlog2.pop %v502
        %v507 = vmul.f32 %v506, 0.6931472
        %v508 = vlog2.pop %v505
        %v509 = vmul.f32 %v508, 0.6931472
        %v510 = vadd.f32 %v490, %v507
        %v511 = vadd.f32 %v493, %v509
        %v512 = vld [vmem:[%s356] sm:$0xf]
        %v513 = vld [vmem:[%s356 + $0x4] sm:$0xf]
        %v514 = vld [vmem:[%s356 + $0x8] sm:$0xf]
        %v515 = vld [vmem:[%s356 + $0xc] sm:$0xf]
        %v516 = vld [vmem:[%s356 + $0x10] sm:$0xf]
        %v517 = vld [vmem:[%s356 + $0x14] sm:$0xf]
        %v518 = vld [vmem:[%s356 + $0x18] sm:$0xf]
        %v519 = vld [vmem:[%s356 + $0x1c] sm:$0xf]
        %v520 = vld [vmem:[%s356 + $0x20] sm:$0xf]
        %v521 = vld [vmem:[%s356 + $0x24] sm:$0xf]
        %v522 = vld [vmem:[%s356 + $0x28] sm:$0xf]
        %v523 = vld [vmem:[%s356 + $0x2c] sm:$0xf]
        %v524 = vld [vmem:[%s356 + $0x30] sm:$0xf]
        %v525 = vld [vmem:[%s356 + $0x34] sm:$0xf]
        %v526 = vld [vmem:[%s356 + $0x38] sm:$0xf]
        %v527 = vld [vmem:[%s356 + $0x3c] sm:$0xf]
        %v528 = vld [vmem:[%s359] sm:$0x1]
        %v530 = vlaneseq
        %v531 = vshrl.u32 %v530, 7
        %v532 = vsub.s32 0, %v531
        %v533 = vrot.slane %v528, %v532
        %v551 = vunpack.c.l.b16 %v512
        %v552 = vunpack.c.l.b16 %v513
        %v553 = vunpack.c.l.b16 %v514
        %v554 = vunpack.c.l.b16 %v515
        %v555 = vunpack.c.l.b16 %v516
        %v556 = vunpack.c.l.b16 %v517
        %v557 = vunpack.c.l.b16 %v518
        %v558 = vunpack.c.l.b16 %v519
        %v559 = vunpack.c.l.b16 %v520
        %v560 = vunpack.c.l.b16 %v521
        %v561 = vunpack.c.l.b16 %v522
        %v562 = vunpack.c.l.b16 %v523
        %v563 = vunpack.c.l.b16 %v524
        %v564 = vunpack.c.l.b16 %v525
        %v565 = vunpack.c.l.b16 %v526
        %v566 = vunpack.c.l.b16 %v527
        %v567 = vpack.c.b16 %v552, %v551
        %v568 = vpack.c.b16 %v554, %v553
        %v569 = vpack.c.b16 %v556, %v555
        %v570 = vpack.c.b16 %v558, %v557
        %v571 = vpack.c.b16 %v560, %v559
        %v572 = vpack.c.b16 %v562, %v561
        %v573 = vpack.c.b16 %v564, %v563
        %v574 = vpack.c.b16 %v566, %v565
        %583 = vmatprep.subr.bf16.mxu0 0
        %584 = vmatpush1.bf16.msra.mxu0 %v567
        %585 = vmatprep.subr.bf16.mxu0 0
        %586 = vmatpush1.bf16.msra.mxu0 %v568
        %587 = vmatprep.subr.bf16.mxu0 0
        %588 = vmatpush1.bf16.msra.mxu0 %v569
        %589 = vmatprep.subr.bf16.mxu0 0
        %590 = vmatpush1.bf16.msra.mxu0 %v570
        %591 = vmatprep.subr.bf16.mxu0 0
        %592 = vmatpush1.bf16.msra.mxu0 %v571
        %593 = vmatprep.subr.bf16.mxu0 0
        %594 = vmatpush1.bf16.msra.mxu0 %v572
        %595 = vmatprep.subr.bf16.mxu0 0
        %596 = vmatpush1.bf16.msra.mxu0 %v573
        %597 = vmatprep.subr.bf16.mxu0 0
        %598 = vmatpush1.bf16.msra.mxu0 %v574
        %599 = vmatprep.subr.bf16.mxu0 0
        %600 = vmatpush1.bf16.msra.mxu0 0
        %601 = vmatprep.subr.bf16.mxu0 0
        %602 = vmatpush1.bf16.msra.mxu0 0
        %603 = vmatprep.subr.bf16.mxu0 0
        %604 = vmatpush1.bf16.msra.mxu0 0
        %605 = vmatprep.subr.bf16.mxu0 0
        %606 = vmatpush1.bf16.msra.mxu0 0
        %607 = vmatprep.subr.bf16.mxu0 0
        %608 = vmatpush1.bf16.msra.mxu0 0
        %609 = vmatprep.subr.bf16.mxu0 0
        %610 = vmatpush1.bf16.msra.mxu0 0
        %611 = vmatprep.subr.bf16.mxu0 0
        %612 = vmatpush1.bf16.msra.mxu0 0
        %613 = vmatprep.subr.bf16.mxu0 0
        %614 = vmatpush1.bf16.msra.mxu0 0
        %615 = vmatprep.mubr.bf16.mxu0 0
        %616 = vmatmul.mubr.bf16.gmra.mrb[0].mxu0 %v396
        %v617 = vpop.f32.mrb[0].mxu0
        %v618 = vadd.f32 %v533, %v617
        %v619 = vpop.f32.mrb[0].mxu0
        %v620 = vpop.f32.mrb[0].mxu0
        %v621 = vadd.f32 %v533, %v620
        %v622 = vpop.f32.mrb[0].mxu0
        %623 = vdwg.mxu0
        %v624 = vsub.f32 %v618, %v510
        %v625 = vsub.f32 %v621, %v511
        %v626 = vld [vmem:[#allocation2] sm:$0xff]
        %v627 = vld [vmem:[#allocation2 + $0x8] sm:$0xff]
        %v628 = vld [vmem:[#allocation2 + $0x10] sm:$0xff]
        %v629 = vld [vmem:[#allocation2 + $0x18] sm:$0xff]
        %v630 = vld [vmem:[#allocation2 + $0x20] sm:$0xff]
        %v631 = vld [vmem:[#allocation2 + $0x28] sm:$0xff]
        %v632 = vld [vmem:[#allocation2 + $0x30] sm:$0xff]
        %v633 = vld [vmem:[#allocation2 + $0x38] sm:$0xff]
        %v634 = vld [vmem:[#allocation2 + $0x40] sm:$0xff]
        %v635 = vld [vmem:[#allocation2 + $0x48] sm:$0xff]
        %v636 = vld [vmem:[#allocation2 + $0x50] sm:$0xff]
        %v637 = vld [vmem:[#allocation2 + $0x58] sm:$0xff]
        %v638 = vld [vmem:[#allocation2 + $0x60] sm:$0xff]
        %v639 = vld [vmem:[#allocation2 + $0x68] sm:$0xff]
        %v640 = vld [vmem:[#allocation2 + $0x70] sm:$0xff]
        %v641 = vld [vmem:[#allocation2 + $0x78] sm:$0xff]
        %v642 = vld [vmem:[#allocation2 + $0x80] sm:$0xff]
        %v643 = vld [vmem:[#allocation2 + $0x88] sm:$0xff]
        %v644 = vld [vmem:[#allocation2 + $0x90] sm:$0xff]
        %v645 = vld [vmem:[#allocation2 + $0x98] sm:$0xff]
        %v646 = vld [vmem:[#allocation2 + $0xa0] sm:$0xff]
        %v647 = vld [vmem:[#allocation2 + $0xa8] sm:$0xff]
        %v648 = vld [vmem:[#allocation2 + $0xb0] sm:$0xff]
        %v649 = vld [vmem:[#allocation2 + $0xb8] sm:$0xff]
        %v650 = vld [vmem:[#allocation2 + $0xc0] sm:$0xff]
        %v651 = vld [vmem:[#allocation2 + $0xc8] sm:$0xff]
        %v652 = vld [vmem:[#allocation2 + $0xd0] sm:$0xff]
        %v653 = vld [vmem:[#allocation2 + $0xd8] sm:$0xff]
        %v654 = vld [vmem:[#allocation2 + $0xe0] sm:$0xff]
        %v655 = vld [vmem:[#allocation2 + $0xe8] sm:$0xff]
        %v656 = vld [vmem:[#allocation2 + $0xf0] sm:$0xff]
        %v657 = vld [vmem:[#allocation2 + $0xf8] sm:$0xff]
        %v658 = vld [vmem:[#allocation2 + $0x100] sm:$0xff]
        %v659 = vld [vmem:[#allocation2 + $0x108] sm:$0xff]
        %v660 = vld [vmem:[#allocation2 + $0x110] sm:$0xff]
        %v661 = vld [vmem:[#allocation2 + $0x118] sm:$0xff]
        %v662 = vld [vmem:[#allocation2 + $0x120] sm:$0xff]
        %v663 = vld [vmem:[#allocation2 + $0x128] sm:$0xff]
        %v664 = vld [vmem:[#allocation2 + $0x130] sm:$0xff]
        %v665 = vld [vmem:[#allocation2 + $0x138] sm:$0xff]
        %v666 = vld [vmem:[#allocation2 + $0x140] sm:$0xff]
        %v667 = vld [vmem:[#allocation2 + $0x148] sm:$0xff]
        %v668 = vld [vmem:[#allocation2 + $0x150] sm:$0xff]
        %v669 = vld [vmem:[#allocation2 + $0x158] sm:$0xff]
        %v670 = vld [vmem:[#allocation2 + $0x160] sm:$0xff]
        %v671 = vld [vmem:[#allocation2 + $0x168] sm:$0xff]
        %v672 = vld [vmem:[#allocation2 + $0x170] sm:$0xff]
        %v673 = vld [vmem:[#allocation2 + $0x178] sm:$0xff]
        %v674 = vld [vmem:[#allocation2 + $0x180] sm:$0xff]
        %v675 = vld [vmem:[#allocation2 + $0x188] sm:$0xff]
        %v676 = vld [vmem:[#allocation2 + $0x190] sm:$0xff]
        %v677 = vld [vmem:[#allocation2 + $0x198] sm:$0xff]
        %v678 = vld [vmem:[#allocation2 + $0x1a0] sm:$0xff]
        %v679 = vld [vmem:[#allocation2 + $0x1a8] sm:$0xff]
        %v680 = vld [vmem:[#allocation2 + $0x1b0] sm:$0xff]
        %v681 = vld [vmem:[#allocation2 + $0x1b8] sm:$0xff]
        %v682 = vld [vmem:[#allocation2 + $0x1c0] sm:$0xff]
        %v683 = vld [vmem:[#allocation2 + $0x1c8] sm:$0xff]
        %v684 = vld [vmem:[#allocation2 + $0x1d0] sm:$0xff]
        %v685 = vld [vmem:[#allocation2 + $0x1d8] sm:$0xff]
        %v686 = vld [vmem:[#allocation2 + $0x1e0] sm:$0xff]
        %v687 = vld [vmem:[#allocation2 + $0x1e8] sm:$0xff]
        %v688 = vld [vmem:[#allocation2 + $0x1f0] sm:$0xff]
        %v689 = vld [vmem:[#allocation2 + $0x1f8] sm:$0xff]
        %v754 = vunpack.c.l.b16 %v626
        %v755 = vunpack.c.h.b16 %v626
        %v756 = vunpack.c.l.b16 %v627
        %v757 = vunpack.c.h.b16 %v627
        %v758 = vunpack.c.l.b16 %v628
        %v759 = vunpack.c.h.b16 %v628
        %v760 = vunpack.c.l.b16 %v629
        %v761 = vunpack.c.h.b16 %v629
        %v762 = vunpack.c.l.b16 %v630
        %v763 = vunpack.c.h.b16 %v630
        %v764 = vunpack.c.l.b16 %v631
        %v765 = vunpack.c.h.b16 %v631
        %v766 = vunpack.c.l.b16 %v632
        %v767 = vunpack.c.h.b16 %v632
        %v768 = vunpack.c.l.b16 %v633
        %v769 = vunpack.c.h.b16 %v633
        %v770 = vunpack.c.l.b16 %v634
        %v771 = vunpack.c.h.b16 %v634
        %v772 = vunpack.c.l.b16 %v635
        %v773 = vunpack.c.h.b16 %v635
        %v774 = vunpack.c.l.b16 %v636
        %v775 = vunpack.c.h.b16 %v636
        %v776 = vunpack.c.l.b16 %v637
        %v777 = vunpack.c.h.b16 %v637
        %v778 = vunpack.c.l.b16 %v638
        %v779 = vunpack.c.h.b16 %v638
        %v780 = vunpack.c.l.b16 %v639
        %v781 = vunpack.c.h.b16 %v639
        %v782 = vunpack.c.l.b16 %v640
        %v783 = vunpack.c.h.b16 %v640
        %v784 = vunpack.c.l.b16 %v641
        %v785 = vunpack.c.h.b16 %v641
        %v786 = vunpack.c.l.b16 %v642
        %v787 = vunpack.c.h.b16 %v642
        %v788 = vunpack.c.l.b16 %v643
        %v789 = vunpack.c.h.b16 %v643
        %v790 = vunpack.c.l.b16 %v644
        %v791 = vunpack.c.h.b16 %v644
        %v792 = vunpack.c.l.b16 %v645
        %v793 = vunpack.c.h.b16 %v645
        %v794 = vunpack.c.l.b16 %v646
        %v795 = vunpack.c.h.b16 %v646
        %v796 = vunpack.c.l.b16 %v647
        %v797 = vunpack.c.h.b16 %v647
        %v798 = vunpack.c.l.b16 %v648
        %v799 = vunpack.c.h.b16 %v648
        %v800 = vunpack.c.l.b16 %v649
        %v801 = vunpack.c.h.b16 %v649
        %v802 = vunpack.c.l.b16 %v650
        %v803 = vunpack.c.h.b16 %v650
        %v804 = vunpack.c.l.b16 %v651
        %v805 = vunpack.c.h.b16 %v651
        %v806 = vunpack.c.l.b16 %v652
        %v807 = vunpack.c.h.b16 %v652
        %v808 = vunpack.c.l.b16 %v653
        %v809 = vunpack.c.h.b16 %v653
        %v810 = vunpack.c.l.b16 %v654
        %v811 = vunpack.c.h.b16 %v654
        %v812 = vunpack.c.l.b16 %v655
        %v813 = vunpack.c.h.b16 %v655
        %v814 = vunpack.c.l.b16 %v656
        %v815 = vunpack.c.h.b16 %v656
        %v816 = vunpack.c.l.b16 %v657
        %v817 = vunpack.c.h.b16 %v657
        %v818 = vunpack.c.l.b16 %v658
        %v819 = vunpack.c.h.b16 %v658
        %v820 = vunpack.c.l.b16 %v659
        %v821 = vunpack.c.h.b16 %v659
        %v822 = vunpack.c.l.b16 %v660
        %v823 = vunpack.c.h.b16 %v660
        %v824 = vunpack.c.l.b16 %v661
        %v825 = vunpack.c.h.b16 %v661
        %v826 = vunpack.c.l.b16 %v662
        %v827 = vunpack.c.h.b16 %v662
        %v828 = vunpack.c.l.b16 %v663
        %v829 = vunpack.c.h.b16 %v663
        %v830 = vunpack.c.l.b16 %v664
        %v831 = vunpack.c.h.b16 %v664
        %v832 = vunpack.c.l.b16 %v665
        %v833 = vunpack.c.h.b16 %v665
        %v834 = vunpack.c.l.b16 %v666
        %v835 = vunpack.c.h.b16 %v666
        %v836 = vunpack.c.l.b16 %v667
        %v837 = vunpack.c.h.b16 %v667
        %v838 = vunpack.c.l.b16 %v668
        %v839 = vunpack.c.h.b16 %v668
        %v840 = vunpack.c.l.b16 %v669
        %v841 = vunpack.c.h.b16 %v669
        %v842 = vunpack.c.l.b16 %v670
        %v843 = vunpack.c.h.b16 %v670
        %v844 = vunpack.c.l.b16 %v671
        %v845 = vunpack.c.h.b16 %v671
        %v846 = vunpack.c.l.b16 %v672
        %v847 = vunpack.c.h.b16 %v672
        %v848 = vunpack.c.l.b16 %v673
        %v849 = vunpack.c.h.b16 %v673
        %v850 = vunpack.c.l.b16 %v674
        %v851 = vunpack.c.h.b16 %v674
        %v852 = vunpack.c.l.b16 %v675
        %v853 = vunpack.c.h.b16 %v675
        %v854 = vunpack.c.l.b16 %v676
        %v855 = vunpack.c.h.b16 %v676
        %v856 = vunpack.c.l.b16 %v677
        %v857 = vunpack.c.h.b16 %v677
        %v858 = vunpack.c.l.b16 %v678
        %v859 = vunpack.c.h.b16 %v678
        %v860 = vunpack.c.l.b16 %v679
        %v861 = vunpack.c.h.b16 %v679
        %v862 = vunpack.c.l.b16 %v680
        %v863 = vunpack.c.h.b16 %v680
        %v864 = vunpack.c.l.b16 %v681
        %v865 = vunpack.c.h.b16 %v681
        %v866 = vunpack.c.l.b16 %v682
        %v867 = vunpack.c.h.b16 %v682
        %v868 = vunpack.c.l.b16 %v683
        %v869 = vunpack.c.h.b16 %v683
        %v870 = vunpack.c.l.b16 %v684
        %v871 = vunpack.c.h.b16 %v684
        %v872 = vunpack.c.l.b16 %v685
        %v873 = vunpack.c.h.b16 %v685
        %v874 = vunpack.c.l.b16 %v686
        %v875 = vunpack.c.h.b16 %v686
        %v876 = vunpack.c.l.b16 %v687
        %v877 = vunpack.c.h.b16 %v687
        %v878 = vunpack.c.l.b16 %v688
        %v879 = vunpack.c.h.b16 %v688
        %v880 = vunpack.c.l.b16 %v689
        %v881 = vunpack.c.h.b16 %v689
        %v882 = vpack.c.b16 %v762, %v754
        %v883 = vpack.c.b16 %v763, %v755
        %v884 = vpack.c.b16 %v764, %v756
        %v885 = vpack.c.b16 %v765, %v757
        %v886 = vpack.c.b16 %v766, %v758
        %v887 = vpack.c.b16 %v767, %v759
        %v888 = vpack.c.b16 %v768, %v760
        %v889 = vpack.c.b16 %v769, %v761
        %v890 = vpack.c.b16 %v778, %v770
        %v891 = vpack.c.b16 %v779, %v771
        %v892 = vpack.c.b16 %v780, %v772
        %v893 = vpack.c.b16 %v781, %v773
        %v894 = vpack.c.b16 %v782, %v774
        %v895 = vpack.c.b16 %v783, %v775
        %v896 = vpack.c.b16 %v784, %v776
        %v897 = vpack.c.b16 %v785, %v777
        %v898 = vpack.c.b16 %v794, %v786
        %v899 = vpack.c.b16 %v795, %v787
        %v900 = vpack.c.b16 %v796, %v788
        %v901 = vpack.c.b16 %v797, %v789
        %v902 = vpack.c.b16 %v798, %v790
        %v903 = vpack.c.b16 %v799, %v791
        %v904 = vpack.c.b16 %v800, %v792
        %v905 = vpack.c.b16 %v801, %v793
        %v906 = vpack.c.b16 %v810, %v802
        %v907 = vpack.c.b16 %v811, %v803
        %v908 = vpack.c.b16 %v812, %v804
        %v909 = vpack.c.b16 %v813, %v805
        %v910 = vpack.c.b16 %v814, %v806
        %v911 = vpack.c.b16 %v815, %v807
        %v912 = vpack.c.b16 %v816, %v808
        %v913 = vpack.c.b16 %v817, %v809
        %v914 = vpack.c.b16 %v826, %v818
        %v915 = vpack.c.b16 %v827, %v819
        %v916 = vpack.c.b16 %v828, %v820
        %v917 = vpack.c.b16 %v829, %v821
        %v918 = vpack.c.b16 %v830, %v822
        %v919 = vpack.c.b16 %v831, %v823
        %v920 = vpack.c.b16 %v832, %v824
        %v921 = vpack.c.b16 %v833, %v825
        %v922 = vpack.c.b16 %v842, %v834
        %v923 = vpack.c.b16 %v843, %v835
        %v924 = vpack.c.b16 %v844, %v836
        %v925 = vpack.c.b16 %v845, %v837
        %v926 = vpack.c.b16 %v846, %v838
        %v927 = vpack.c.b16 %v847, %v839
        %v928 = vpack.c.b16 %v848, %v840
        %v929 = vpack.c.b16 %v849, %v841
        %v930 = vpack.c.b16 %v858, %v850
        %v931 = vpack.c.b16 %v859, %v851
        %v932 = vpack.c.b16 %v860, %v852
        %v933 = vpack.c.b16 %v861, %v853
        %v934 = vpack.c.b16 %v862, %v854
        %v935 = vpack.c.b16 %v863, %v855
        %v936 = vpack.c.b16 %v864, %v856
        %v937 = vpack.c.b16 %v865, %v857
        %v938 = vpack.c.b16 %v874, %v866
        %v939 = vpack.c.b16 %v875, %v867
        %v940 = vpack.c.b16 %v876, %v868
        %v941 = vpack.c.b16 %v877, %v869
        %v942 = vpack.c.b16 %v878, %v870
        %v943 = vpack.c.b16 %v879, %v871
        %v944 = vpack.c.b16 %v880, %v872
        %v945 = vpack.c.b16 %v881, %v873
        %1010 = vmatprep.subr.bf16.mxu0 %v883
        %1011 = vmatpush1.bf16.msra.mxu0 %v882
        %1012 = vmatprep.subr.bf16.mxu0 %v891
        %1013 = vmatpush1.bf16.msra.mxu0 %v890
        %1014 = vmatprep.subr.bf16.mxu0 %v899
        %1015 = vmatpush1.bf16.msra.mxu0 %v898
        %1016 = vmatprep.subr.bf16.mxu0 %v907
        %1017 = vmatpush1.bf16.msra.mxu0 %v906
        %1018 = vmatprep.subr.bf16.mxu0 %v915
        %1019 = vmatpush1.bf16.msra.mxu0 %v914
        %1020 = vmatprep.subr.bf16.mxu0 %v923
        %1021 = vmatpush1.bf16.msra.mxu0 %v922
        %1022 = vmatprep.subr.bf16.mxu0 %v931
        %1023 = vmatpush1.bf16.msra.mxu0 %v930
        %1024 = vmatprep.subr.bf16.mxu0 %v939
        %1025 = vmatpush1.bf16.msra.mxu0 %v938
        %1026 = vmatprep.subr.bf16.mxu0 0
        %1027 = vmatpush1.bf16.msra.mxu0 0
        %1028 = vmatprep.subr.bf16.mxu0 0
        %1029 = vmatpush1.bf16.msra.mxu0 0
        %1030 = vmatprep.subr.bf16.mxu0 0
        %1031 = vmatpush1.bf16.msra.mxu0 0
        %1032 = vmatprep.subr.bf16.mxu0 0
        %1033 = vmatpush1.bf16.msra.mxu0 0
        %1034 = vmatprep.subr.bf16.mxu0 0
        %1035 = vmatpush1.bf16.msra.mxu0 0
        %1036 = vmatprep.subr.bf16.mxu0 0
        %1037 = vmatpush1.bf16.msra.mxu0 0
        %1038 = vmatprep.subr.bf16.mxu0 0
        %1039 = vmatpush1.bf16.msra.mxu0 0
        %1040 = vmatprep.subr.bf16.mxu0 0
        %1041 = vmatpush1.bf16.msra.mxu0 0
        %1042 = vmatprep.mubr.bf16.mxu0 0
        %1043 = vmatmul.mubr.bf16.gmra.mrb[0].mxu0 %v396
        %v1044 = vpop.f32.mrb[0].mxu0
        %v1045 = vadd.f32 0.0, %v1044
        %v1046 = vpop.f32.mrb[0].mxu0
        %v1047 = vadd.f32 0.0, %v1046
        %v1048 = vpop.f32.mrb[0].mxu0
        %v1049 = vadd.f32 0.0, %v1048
        %v1050 = vpop.f32.mrb[0].mxu0
        %v1051 = vadd.f32 0.0, %v1050
        %1052 = vdwg.mxu0
        %1053 = vmatprep.subr.bf16.mxu0 %v885
        %1054 = vmatpush1.bf16.msra.mxu0 %v884
        %1055 = vmatprep.subr.bf16.mxu0 %v893
        %1056 = vmatpush1.bf16.msra.mxu0 %v892
        %1057 = vmatprep.subr.bf16.mxu0 %v901
        %1058 = vmatpush1.bf16.msra.mxu0 %v900
        %1059 = vmatprep.subr.bf16.mxu0 %v909
        %1060 = vmatpush1.bf16.msra.mxu0 %v908
        %1061 = vmatprep.subr.bf16.mxu0 %v917
        %1062 = vmatpush1.bf16.msra.mxu0 %v916
        %1063 = vmatprep.subr.bf16.mxu0 %v925
        %1064 = vmatpush1.bf16.msra.mxu0 %v924
        %1065 = vmatprep.subr.bf16.mxu0 %v933
        %1066 = vmatpush1.bf16.msra.mxu0 %v932
        %1067 = vmatprep.subr.bf16.mxu0 %v941
        %1068 = vmatpush1.bf16.msra.mxu0 %v940
        %1069 = vmatprep.subr.bf16.mxu0 0
        %1070 = vmatpush1.bf16.msra.mxu0 0
        %1071 = vmatprep.subr.bf16.mxu0 0
        %1072 = vmatpush1.bf16.msra.mxu0 0
        %1073 = vmatprep.subr.bf16.mxu0 0
        %1074 = vmatpush1.bf16.msra.mxu0 0
        %1075 = vmatprep.subr.bf16.mxu0 0
        %1076 = vmatpush1.bf16.msra.mxu0 0
        %1077 = vmatprep.subr.bf16.mxu0 0
        %1078 = vmatpush1.bf16.msra.mxu0 0
        %1079 = vmatprep.subr.bf16.mxu0 0
        %1080 = vmatpush1.bf16.msra.mxu0 0
        %1081 = vmatprep.subr.bf16.mxu0 0
        %1082 = vmatpush1.bf16.msra.mxu0 0
        %1083 = vmatprep.subr.bf16.mxu0 0
        %1084 = vmatpush1.bf16.msra.mxu0 0
        %1085 = vmatprep.mubr.bf16.mxu0 0
        %1086 = vmatmul.mubr.bf16.gmra.mrb[0].mxu0 %v396
        %v1087 = vpop.f32.mrb[0].mxu0
        %v1088 = vadd.f32 0.0, %v1087
        %v1089 = vpop.f32.mrb[0].mxu0
        %v1090 = vadd.f32 0.0, %v1089
        %v1091 = vpop.f32.mrb[0].mxu0
        %v1092 = vadd.f32 0.0, %v1091
        %v1093 = vpop.f32.mrb[0].mxu0
        %v1094 = vadd.f32 0.0, %v1093
        %1095 = vdwg.mxu0
        %1096 = vmatprep.subr.bf16.mxu0 %v887
        %1097 = vmatpush1.bf16.msra.mxu0 %v886
        %1098 = vmatprep.subr.bf16.mxu0 %v895
        %1099 = vmatpush1.bf16.msra.mxu0 %v894
        %1100 = vmatprep.subr.bf16.mxu0 %v903
        %1101 = vmatpush1.bf16.msra.mxu0 %v902
        %1102 = vmatprep.subr.bf16.mxu0 %v911
        %1103 = vmatpush1.bf16.msra.mxu0 %v910
        %1104 = vmatprep.subr.bf16.mxu0 %v919
        %1105 = vmatpush1.bf16.msra.mxu0 %v918
        %1106 = vmatprep.subr.bf16.mxu0 %v927
        %1107 = vmatpush1.bf16.msra.mxu0 %v926
        %1108 = vmatprep.subr.bf16.mxu0 %v935
        %1109 = vmatpush1.bf16.msra.mxu0 %v934
        %1110 = vmatprep.subr.bf16.mxu0 %v943
        %1111 = vmatpush1.bf16.msra.mxu0 %v942
        %1112 = vmatprep.subr.bf16.mxu0 0
        %1113 = vmatpush1.bf16.msra.mxu0 0
        %1114 = vmatprep.subr.bf16.mxu0 0
        %1115 = vmatpush1.bf16.msra.mxu0 0
        %1116 = vmatprep.subr.bf16.mxu0 0
        %1117 = vmatpush1.bf16.msra.mxu0 0
        %1118 = vmatprep.subr.bf16.mxu0 0
        %1119 = vmatpush1.bf16.msra.mxu0 0
        %1120 = vmatprep.subr.bf16.mxu0 0
        %1121 = vmatpush1.bf16.msra.mxu0 0
        %1122 = vmatprep.subr.bf16.mxu0 0
        %1123 = vmatpush1.bf16.msra.mxu0 0
        %1124 = vmatprep.subr.bf16.mxu0 0
        %1125 = vmatpush1.bf16.msra.mxu0 0
        %1126 = vmatprep.subr.bf16.mxu0 0
        %1127 = vmatpush1.bf16.msra.mxu0 0
        %1128 = vmatprep.mubr.bf16.mxu0 0
        %1129 = vmatmul.mubr.bf16.gmra.mrb[0].mxu0 %v396
        %v1130 = vpop.f32.mrb[0].mxu0
        %v1131 = vadd.f32 0.0, %v1130
        %v1132 = vpop.f32.mrb[0].mxu0
        %v1133 = vadd.f32 0.0, %v1132
        %v1134 = vpop.f32.mrb[0].mxu0
        %v1135 = vadd.f32 0.0, %v1134
        %v1136 = vpop.f32.mrb[0].mxu0
        %v1137 = vadd.f32 0.0, %v1136
        %1138 = vdwg.mxu0
        %1139 = vmatprep.subr.bf16.mxu0 %v889
        %1140 = vmatpush1.bf16.msra.mxu0 %v888
        %1141 = vmatprep.subr.bf16.mxu0 %v897
        %1142 = vmatpush1.bf16.msra.mxu0 %v896
        %1143 = vmatprep.subr.bf16.mxu0 %v905
        %1144 = vmatpush1.bf16.msra.mxu0 %v904
        %1145 = vmatprep.subr.bf16.mxu0 %v913
        %1146 = vmatpush1.bf16.msra.mxu0 %v912
        %1147 = vmatprep.subr.bf16.mxu0 %v921
        %1148 = vmatpush1.bf16.msra.mxu0 %v920
        %1149 = vmatprep.subr.bf16.mxu0 %v929
        %1150 = vmatpush1.bf16.msra.mxu0 %v928
        %1151 = vmatprep.subr.bf16.mxu0 %v937
        %1152 = vmatpush1.bf16.msra.mxu0 %v936
        %1153 = vmatprep.subr.bf16.mxu0 %v945
        %1154 = vmatpush1.bf16.msra.mxu0 %v944
        %1155 = vmatprep.subr.bf16.mxu0 0
        %1156 = vmatpush1.bf16.msra.mxu0 0
        %1157 = vmatprep.subr.bf16.mxu0 0
        %1158 = vmatpush1.bf16.msra.mxu0 0
        %1159 = vmatprep.subr.bf16.mxu0 0
        %1160 = vmatpush1.bf16.msra.mxu0 0
        %1161 = vmatprep.subr.bf16.mxu0 0
        %1162 = vmatpush1.bf16.msra.mxu0 0
        %1163 = vmatprep.subr.bf16.mxu0 0
        %1164 = vmatpush1.bf16.msra.mxu0 0
        %1165 = vmatprep.subr.bf16.mxu0 0
        %1166 = vmatpush1.bf16.msra.mxu0 0
        %1167 = vmatprep.subr.bf16.mxu0 0
        %1168 = vmatpush1.bf16.msra.mxu0 0
        %1169 = vmatprep.subr.bf16.mxu0 0
        %1170 = vmatpush1.bf16.msra.mxu0 0
        %1171 = vmatprep.mubr.bf16.mxu0 0
        %1172 = vmatmul.mubr.bf16.gmra.mrb[0].mxu0 %v396
        %v1173 = vpop.f32.mrb[0].mxu0
        %v1174 = vadd.f32 0.0, %v1173
        %v1175 = vpop.f32.mrb[0].mxu0
        %v1176 = vadd.f32 0.0, %v1175
        %v1177 = vpop.f32.mrb[0].mxu0
        %v1178 = vadd.f32 0.0, %v1177
        %v1179 = vpop.f32.mrb[0].mxu0
        %v1180 = vadd.f32 0.0, %v1179
        %1181 = vdwg.mxu0
        %v1182 = vcombine.low %v1045, %v1088
        %v1183 = vcombine.high %v1045, %v1088
        %v1185 = vunpack.c.l.s4 1983009808
        %v1186 = vunpack.c.0.s8 %v1185
        %v1187 = vlaneseq
        %v1188 = vshrl.u32 %v1187, 7
        %v1189 = vsub.s32 %v1186, %v1188
        %v1190 = vrot.slane %v1182, %v1189
        %v1192 = vunpack.c.l.s4 1983009808
        %v1193 = vunpack.c.0.s8 %v1192
        %v1194 = vlaneseq
        %v1195 = vshrl.u32 %v1194, 7
        %v1196 = vsub.s32 %v1193, %v1195
        %v1197 = vrot.slane %v1183, %v1196
        %v1198 = vcombine.low %v1047, %v1090
        %v1199 = vcombine.high %v1047, %v1090
        %v1201 = vunpack.c.l.s4 1983009808
        %v1202 = vunpack.c.0.s8 %v1201
        %v1203 = vlaneseq
        %v1204 = vshrl.u32 %v1203, 7
        %v1205 = vsub.s32 %v1202, %v1204
        %v1206 = vrot.slane %v1198, %v1205
        %v1208 = vunpack.c.l.s4 1983009808
        %v1209 = vunpack.c.0.s8 %v1208
        %v1210 = vlaneseq
        %v1211 = vshrl.u32 %v1210, 7
        %v1212 = vsub.s32 %v1209, %v1211
        %v1213 = vrot.slane %v1199, %v1212
        %v1214 = vcombine.low %v1131, %v1174
        %v1215 = vcombine.high %v1131, %v1174
        %v1217 = vunpack.c.l.s4 1983009808
        %v1218 = vunpack.c.0.s8 %v1217
        %v1219 = vlaneseq
        %v1220 = vshrl.u32 %v1219, 7
        %v1221 = vsub.s32 %v1218, %v1220
        %v1222 = vrot.slane %v1214, %v1221
        %v1224 = vunpack.c.l.s4 1983009808
        %v1225 = vunpack.c.0.s8 %v1224
        %v1226 = vlaneseq
        %v1227 = vshrl.u32 %v1226, 7
        %v1228 = vsub.s32 %v1225, %v1227
        %v1229 = vrot.slane %v1215, %v1228
        %v1230 = vcombine.low %v1133, %v1176
        %v1231 = vcombine.high %v1133, %v1176
        %v1233 = vunpack.c.l.s4 1983009808
        %v1234 = vunpack.c.0.s8 %v1233
        %v1235 = vlaneseq
        %v1236 = vshrl.u32 %v1235, 7
        %v1237 = vsub.s32 %v1234, %v1236
        %v1238 = vrot.slane %v1230, %v1237
        %v1240 = vunpack.c.l.s4 1983009808
        %v1241 = vunpack.c.0.s8 %v1240
        %v1242 = vlaneseq
        %v1243 = vshrl.u32 %v1242, 7
        %v1244 = vsub.s32 %v1241, %v1243
        %v1245 = vrot.slane %v1231, %v1244
        %v1246 = vcombine.low %v1190, %v1206
        %v1247 = vcombine.high %v1190, %v1206
        %v1249 = vunpack.c.l.s4 1934713408
        %v1250 = vunpack.c.0.s8 %v1249
        %v1251 = vlaneseq
        %v1252 = vshrl.u32 %v1251, 7
        %v1253 = vsub.s32 %v1250, %v1252
        %v1254 = vrot.slane %v1246, %v1253
        %v1256 = vunpack.c.l.s4 1934713408
        %v1257 = vunpack.c.0.s8 %v1256
        %v1258 = vlaneseq
        %v1259 = vshrl.u32 %v1258, 7
        %v1260 = vsub.s32 %v1257, %v1259
        %v1261 = vrot.slane %v1247, %v1260
        %v1262 = vcombine.low %v1197, %v1213
        %v1263 = vcombine.high %v1197, %v1213
        %v1265 = vunpack.c.l.s4 1934713408
        %v1266 = vunpack.c.0.s8 %v1265
        %v1267 = vlaneseq
        %v1268 = vshrl.u32 %v1267, 7
        %v1269 = vsub.s32 %v1266, %v1268
        %v1270 = vrot.slane %v1262, %v1269
        %v1272 = vunpack.c.l.s4 1934713408
        %v1273 = vunpack.c.0.s8 %v1272
        %v1274 = vlaneseq
        %v1275 = vshrl.u32 %v1274, 7
        %v1276 = vsub.s32 %v1273, %v1275
        %v1277 = vrot.slane %v1263, %v1276
        %v1278 = vcombine.low %v1222, %v1238
        %v1279 = vcombine.high %v1222, %v1238
        %v1281 = vunpack.c.l.s4 1934713408
        %v1282 = vunpack.c.0.s8 %v1281
        %v1283 = vlaneseq
        %v1284 = vshrl.u32 %v1283, 7
        %v1285 = vsub.s32 %v1282, %v1284
        %v1286 = vrot.slane %v1278, %v1285
        %v1288 = vunpack.c.l.s4 1934713408
        %v1289 = vunpack.c.0.s8 %v1288
        %v1290 = vlaneseq
        %v1291 = vshrl.u32 %v1290, 7
        %v1292 = vsub.s32 %v1289, %v1291
        %v1293 = vrot.slane %v1279, %v1292
        %v1294 = vcombine.low %v1229, %v1245
        %v1295 = vcombine.high %v1229, %v1245
        %v1297 = vunpack.c.l.s4 1934713408
        %v1298 = vunpack.c.0.s8 %v1297
        %v1299 = vlaneseq
        %v1300 = vshrl.u32 %v1299, 7
        %v1301 = vsub.s32 %v1298, %v1300
        %v1302 = vrot.slane %v1294, %v1301
        %v1304 = vunpack.c.l.s4 1934713408
        %v1305 = vunpack.c.0.s8 %v1304
        %v1306 = vlaneseq
        %v1307 = vshrl.u32 %v1306, 7
        %v1308 = vsub.s32 %v1305, %v1307
        %v1309 = vrot.slane %v1295, %v1308
        %v1310 = vcombine.low %v1254, %v1286
        %v1311 = vcombine.high %v1254, %v1286
        %v1312 = vcombine.low %v1261, %v1293
        %v1313 = vcombine.high %v1261, %v1293
        %v1314 = vcombine.low %v1270, %v1302
        %v1315 = vcombine.high %v1270, %v1302
        %v1316 = vcombine.low %v1277, %v1309
        %v1317 = vcombine.high %v1277, %v1309
        %v1318 = vcombine.low %v1049, %v1092
        %v1319 = vcombine.high %v1049, %v1092
        %v1321 = vunpack.c.l.s4 1983009808
        %v1322 = vunpack.c.0.s8 %v1321
        %v1323 = vlaneseq
        %v1324 = vshrl.u32 %v1323, 7
        %v1325 = vsub.s32 %v1322, %v1324
        %v1326 = vrot.slane %v1318, %v1325
        %v1328 = vunpack.c.l.s4 1983009808
        %v1329 = vunpack.c.0.s8 %v1328
        %v1330 = vlaneseq
        %v1331 = vshrl.u32 %v1330, 7
        %v1332 = vsub.s32 %v1329, %v1331
        %v1333 = vrot.slane %v1319, %v1332
        %v1334 = vcombine.low %v1051, %v1094
        %v1335 = vcombine.high %v1051, %v1094
        %v1337 = vunpack.c.l.s4 1983009808
        %v1338 = vunpack.c.0.s8 %v1337
        %v1339 = vlaneseq
        %v1340 = vshrl.u32 %v1339, 7
        %v1341 = vsub.s32 %v1338, %v1340
        %v1342 = vrot.slane %v1334, %v1341
        %v1344 = vunpack.c.l.s4 1983009808
        %v1345 = vunpack.c.0.s8 %v1344
        %v1346 = vlaneseq
        %v1347 = vshrl.u32 %v1346, 7
        %v1348 = vsub.s32 %v1345, %v1347
        %v1349 = vrot.slane %v1335, %v1348
        %v1350 = vcombine.low %v1135, %v1178
        %v1351 = vcombine.high %v1135, %v1178
        %v1353 = vunpack.c.l.s4 1983009808
        %v1354 = vunpack.c.0.s8 %v1353
        %v1355 = vlaneseq
        %v1356 = vshrl.u32 %v1355, 7
        %v1357 = vsub.s32 %v1354, %v1356
        %v1358 = vrot.slane %v1350, %v1357
        %v1360 = vunpack.c.l.s4 1983009808
        %v1361 = vunpack.c.0.s8 %v1360
        %v1362 = vlaneseq
        %v1363 = vshrl.u32 %v1362, 7
        %v1364 = vsub.s32 %v1361, %v1363
        %v1365 = vrot.slane %v1351, %v1364
        %v1366 = vcombine.low %v1137, %v1180
        %v1367 = vcombine.high %v1137, %v1180
        %v1369 = vunpack.c.l.s4 1983009808
        %v1370 = vunpack.c.0.s8 %v1369
        %v1371 = vlaneseq
        %v1372 = vshrl.u32 %v1371, 7
        %v1373 = vsub.s32 %v1370, %v1372
        %v1374 = vrot.slane %v1366, %v1373
        %v1376 = vunpack.c.l.s4 1983009808
        %v1377 = vunpack.c.0.s8 %v1376
        %v1378 = vlaneseq
        %v1379 = vshrl.u32 %v1378, 7
        %v1380 = vsub.s32 %v1377, %v1379
        %v1381 = vrot.slane %v1367, %v1380
        %v1382 = vcombine.low %v1326, %v1342
        %v1383 = vcombine.high %v1326, %v1342
        %v1385 = vunpack.c.l.s4 1934713408
        %v1386 = vunpack.c.0.s8 %v1385
        %v1387 = vlaneseq
        %v1388 = vshrl.u32 %v1387, 7
        %v1389 = vsub.s32 %v1386, %v1388
        %v1390 = vrot.slane %v1382, %v1389
        %v1392 = vunpack.c.l.s4 1934713408
        %v1393 = vunpack.c.0.s8 %v1392
        %v1394 = vlaneseq
        %v1395 = vshrl.u32 %v1394, 7
        %v1396 = vsub.s32 %v1393, %v1395
        %v1397 = vrot.slane %v1383, %v1396
        %v1398 = vcombine.low %v1333, %v1349
        %v1399 = vcombine.high %v1333, %v1349
        %v1401 = vunpack.c.l.s4 1934713408
        %v1402 = vunpack.c.0.s8 %v1401
        %v1403 = vlaneseq
        %v1404 = vshrl.u32 %v1403, 7
        %v1405 = vsub.s32 %v1402, %v1404
        %v1406 = vrot.slane %v1398, %v1405
        %v1408 = vunpack.c.l.s4 1934713408
        %v1409 = vunpack.c.0.s8 %v1408
        %v1410 = vlaneseq
        %v1411 = vshrl.u32 %v1410, 7
        %v1412 = vsub.s32 %v1409, %v1411
        %v1413 = vrot.slane %v1399, %v1412
        %v1414 = vcombine.low %v1358, %v1374
        %v1415 = vcombine.high %v1358, %v1374
        %v1417 = vunpack.c.l.s4 1934713408
        %v1418 = vunpack.c.0.s8 %v1417
        %v1419 = vlaneseq
        %v1420 = vshrl.u32 %v1419, 7
        %v1421 = vsub.s32 %v1418, %v1420
        %v1422 = vrot.slane %v1414, %v1421
        %v1424 = vunpack.c.l.s4 1934713408
        %v1425 = vunpack.c.0.s8 %v1424
        %v1426 = vlaneseq
        %v1427 = vshrl.u32 %v1426, 7
        %v1428 = vsub.s32 %v1425, %v1427
        %v1429 = vrot.slane %v1415, %v1428
        %v1430 = vcombine.low %v1365, %v1381
        %v1431 = vcombine.high %v1365, %v1381
        %v1433 = vunpack.c.l.s4 1934713408
        %v1434 = vunpack.c.0.s8 %v1433
        %v1435 = vlaneseq
        %v1436 = vshrl.u32 %v1435, 7
        %v1437 = vsub.s32 %v1434, %v1436
        %v1438 = vrot.slane %v1430, %v1437
        %v1440 = vunpack.c.l.s4 1934713408
        %v1441 = vunpack.c.0.s8 %v1440
        %v1442 = vlaneseq
        %v1443 = vshrl.u32 %v1442, 7
        %v1444 = vsub.s32 %v1441, %v1443
        %v1445 = vrot.slane %v1431, %v1444
        %v1446 = vcombine.low %v1390, %v1422
        %v1447 = vcombine.high %v1390, %v1422
        %v1448 = vcombine.low %v1397, %v1429
        %v1449 = vcombine.high %v1397, %v1429
        %v1450 = vcombine.low %v1406, %v1438
        %v1451 = vcombine.high %v1406, %v1438
        %v1452 = vcombine.low %v1413, %v1445
        %v1453 = vcombine.high %v1413, %v1445
        %v1454 = vld [vmem:[%s364] sm:$0xff]
        %v1455 = vadd.f32 %v1310, %v1454
        %v1456 = vadd.f32 %v1311, %v1454
        %v1457 = vadd.f32 %v1312, %v1454
        %v1458 = vadd.f32 %v1313, %v1454
        %v1459 = vadd.f32 %v1314, %v1454
        %v1460 = vadd.f32 %v1315, %v1454
        %v1461 = vadd.f32 %v1316, %v1454
        %v1462 = vadd.f32 %v1317, %v1454
        %v1463 = vadd.f32 %v1446, %v1454
        %v1464 = vadd.f32 %v1447, %v1454
        %v1465 = vadd.f32 %v1448, %v1454
        %v1466 = vadd.f32 %v1449, %v1454
        %v1467 = vadd.f32 %v1450, %v1454
        %v1468 = vadd.f32 %v1451, %v1454
        %v1469 = vadd.f32 %v1452, %v1454
        %v1470 = vadd.f32 %v1453, %v1454
        %1471 = vmax.xlane.f32.xlu0 %v1455
        %v1472 = vpop.xlane.xlu0 %1471
        %1473 = vmax.xlane.f32.xlu0 %v1456
        %v1474 = vpop.xlane.xlu0 %1473
        %1475 = vmax.xlane.f32.xlu0 %v1457
        %v1476 = vpop.xlane.xlu0 %1475
        %1477 = vmax.xlane.f32.xlu0 %v1458
        %v1478 = vpop.xlane.xlu0 %1477
        %1479 = vmax.xlane.f32.xlu0 %v1459
        %v1480 = vpop.xlane.xlu0 %1479
        %1481 = vmax.xlane.f32.xlu0 %v1460
        %v1482 = vpop.xlane.xlu0 %1481
        %1483 = vmax.xlane.f32.xlu0 %v1461
        %v1484 = vpop.xlane.xlu0 %1483
        %1485 = vmax.xlane.f32.xlu0 %v1462
        %v1486 = vpop.xlane.xlu0 %1485
        %1487 = vmax.xlane.f32.xlu0 %v1463
        %v1488 = vpop.xlane.xlu0 %1487
        %1489 = vmax.xlane.f32.xlu0 %v1464
        %v1490 = vpop.xlane.xlu0 %1489
        %1491 = vmax.xlane.f32.xlu0 %v1465
        %v1492 = vpop.xlane.xlu0 %1491
        %1493 = vmax.xlane.f32.xlu0 %v1466
        %v1494 = vpop.xlane.xlu0 %1493
        %1495 = vmax.xlane.f32.xlu0 %v1467
        %v1496 = vpop.xlane.xlu0 %1495
        %1497 = vmax.xlane.f32.xlu0 %v1468
        %v1498 = vpop.xlane.xlu0 %1497
        %1499 = vmax.xlane.f32.xlu0 %v1469
        %v1500 = vpop.xlane.xlu0 %1499
        %1501 = vmax.xlane.f32.xlu0 %v1470
        %v1502 = vpop.xlane.xlu0 %1501
        %v1503 = vsub.f32 %v1455, %v1472
        %v1504 = vsub.f32 %v1456, %v1474
        %v1505 = vsub.f32 %v1457, %v1476
        %v1506 = vsub.f32 %v1458, %v1478
        %v1507 = vsub.f32 %v1459, %v1480
        %v1508 = vsub.f32 %v1460, %v1482
        %v1509 = vsub.f32 %v1461, %v1484
        %v1510 = vsub.f32 %v1462, %v1486
        %v1511 = vsub.f32 %v1463, %v1488
        %v1512 = vsub.f32 %v1464, %v1490
        %v1513 = vsub.f32 %v1465, %v1492
        %v1514 = vsub.f32 %v1466, %v1494
        %v1515 = vsub.f32 %v1467, %v1496
        %v1516 = vsub.f32 %v1468, %v1498
        %v1517 = vsub.f32 %v1469, %v1500
        %v1518 = vsub.f32 %v1470, %v1502
        %v1519 = vmul.f32 %v1503, 1.442695
        %v1520 = vpow.pop %v1519
        %v1521 = vmul.f32 %v1504, 1.442695
        %v1522 = vpow.pop %v1521
        %v1523 = vmul.f32 %v1505, 1.442695
        %v1524 = vpow.pop %v1523
        %v1525 = vmul.f32 %v1506, 1.442695
        %v1526 = vpow.pop %v1525
        %v1527 = vmul.f32 %v1507, 1.442695
        %v1528 = vpow.pop %v1527
        %v1529 = vmul.f32 %v1508, 1.442695
        %v1530 = vpow.pop %v1529
        %v1531 = vmul.f32 %v1509, 1.442695
        %v1532 = vpow.pop %v1531
        %v1533 = vmul.f32 %v1510, 1.442695
        %v1534 = vpow.pop %v1533
        %v1535 = vmul.f32 %v1511, 1.442695
        %v1536 = vpow.pop %v1535
        %v1537 = vmul.f32 %v1512, 1.442695
        %v1538 = vpow.pop %v1537
        %v1539 = vmul.f32 %v1513, 1.442695
        %v1540 = vpow.pop %v1539
        %v1541 = vmul.f32 %v1514, 1.442695
        %v1542 = vpow.pop %v1541
        %v1543 = vmul.f32 %v1515, 1.442695
        %v1544 = vpow.pop %v1543
        %v1545 = vmul.f32 %v1516, 1.442695
        %v1546 = vpow.pop %v1545
        %v1547 = vmul.f32 %v1517, 1.442695
        %v1548 = vpow.pop %v1547
        %v1549 = vmul.f32 %v1518, 1.442695
        %v1550 = vpow.pop %v1549
        %1551 = vadd.xlane.f32.xlu0 %v1520
        %v1552 = vpop.xlane.xlu0 %1551
        %1553 = vadd.xlane.f32.xlu0 %v1522
        %v1554 = vpop.xlane.xlu0 %1553
        %1555 = vadd.xlane.f32.xlu0 %v1524
        %v1556 = vpop.xlane.xlu0 %1555
        %1557 = vadd.xlane.f32.xlu0 %v1526
        %v1558 = vpop.xlane.xlu0 %1557
        %1559 = vadd.xlane.f32.xlu0 %v1528
        %v1560 = vpop.xlane.xlu0 %1559
        %1561 = vadd.xlane.f32.xlu0 %v1530
        %v1562 = vpop.xlane.xlu0 %1561
        %1563 = vadd.xlane.f32.xlu0 %v1532
        %v1564 = vpop.xlane.xlu0 %1563
        %1565 = vadd.xlane.f32.xlu0 %v1534
        %v1566 = vpop.xlane.xlu0 %1565
        %1567 = vadd.xlane.f32.xlu0 %v1536
        %v1568 = vpop.xlane.xlu0 %1567
        %1569 = vadd.xlane.f32.xlu0 %v1538
        %v1570 = vpop.xlane.xlu0 %1569
        %1571 = vadd.xlane.f32.xlu0 %v1540
        %v1572 = vpop.xlane.xlu0 %1571
        %1573 = vadd.xlane.f32.xlu0 %v1542
        %v1574 = vpop.xlane.xlu0 %1573
        %1575 = vadd.xlane.f32.xlu0 %v1544
        %v1576 = vpop.xlane.xlu0 %1575
        %1577 = vadd.xlane.f32.xlu0 %v1546
        %v1578 = vpop.xlane.xlu0 %1577
        %1579 = vadd.xlane.f32.xlu0 %v1548
        %v1580 = vpop.xlane.xlu0 %1579
        %1581 = vadd.xlane.f32.xlu0 %v1550
        %v1582 = vpop.xlane.xlu0 %1581
        %v1583 = vlog2.pop %v1552
        %v1584 = vmul.f32 %v1583, 0.6931472
        %v1585 = vlog2.pop %v1554
        %v1586 = vmul.f32 %v1585, 0.6931472
        %v1587 = vlog2.pop %v1556
        %v1588 = vmul.f32 %v1587, 0.6931472
        %v1589 = vlog2.pop %v1558
        %v1590 = vmul.f32 %v1589, 0.6931472
        %v1591 = vlog2.pop %v1560
        %v1592 = vmul.f32 %v1591, 0.6931472
        %v1593 = vlog2.pop %v1562
        %v1594 = vmul.f32 %v1593, 0.6931472
        %v1595 = vlog2.pop %v1564
        %v1596 = vmul.f32 %v1595, 0.6931472
        %v1597 = vlog2.pop %v1566
        %v1598 = vmul.f32 %v1597, 0.6931472
        %v1599 = vlog2.pop %v1568
        %v1600 = vmul.f32 %v1599, 0.6931472
        %v1601 = vlog2.pop %v1570
        %v1602 = vmul.f32 %v1601, 0.6931472
        %v1603 = vlog2.pop %v1572
        %v1604 = vmul.f32 %v1603, 0.6931472
        %v1605 = vlog2.pop %v1574
        %v1606 = vmul.f32 %v1605, 0.6931472
        %v1607 = vlog2.pop %v1576
        %v1608 = vmul.f32 %v1607, 0.6931472
        %v1609 = vlog2.pop %v1578
        %v1610 = vmul.f32 %v1609, 0.6931472
        %v1611 = vlog2.pop %v1580
        %v1612 = vmul.f32 %v1611, 0.6931472
        %v1613 = vlog2.pop %v1582
        %v1614 = vmul.f32 %v1613, 0.6931472
        %v1615 = vadd.f32 %v1472, %v1584
        %v1616 = vadd.f32 %v1474, %v1586
        %v1617 = vadd.f32 %v1476, %v1588
        %v1618 = vadd.f32 %v1478, %v1590
        %v1619 = vadd.f32 %v1480, %v1592
        %v1620 = vadd.f32 %v1482, %v1594
        %v1621 = vadd.f32 %v1484, %v1596
        %v1622 = vadd.f32 %v1486, %v1598
        %v1623 = vadd.f32 %v1488, %v1600
        %v1624 = vadd.f32 %v1490, %v1602
        %v1625 = vadd.f32 %v1492, %v1604
        %v1626 = vadd.f32 %v1494, %v1606
        %v1627 = vadd.f32 %v1496, %v1608
        %v1628 = vadd.f32 %v1498, %v1610
        %v1629 = vadd.f32 %v1500, %v1612
        %v1630 = vadd.f32 %v1502, %v1614
        %v1631 = vlaneseq
        %v1632 = vshrl.u32 %v1631, 7
        %v1633 = vsub.s32 0, %v1632
        %v1634 = vrot.slane %v624, %v1633
        %1636 = vbcast.lane.b32.xlu0 %v1634, 256
        %v1637 = vpop.permute.xlu0 %1636
        %v1638 = vlaneseq
        %v1639 = vshrl.u32 %v1638, 7
        %v1640 = vsub.s32 1, %v1639
        %v1641 = vrot.slane %v624, %v1640
        %1643 = vbcast.lane.b32.xlu0 %v1641, 256
        %v1644 = vpop.permute.xlu0 %1643
        %v1645 = vlaneseq
        %v1646 = vshrl.u32 %v1645, 7
        %v1647 = vsub.s32 2, %v1646
        %v1648 = vrot.slane %v624, %v1647
        %1650 = vbcast.lane.b32.xlu0 %v1648, 256
        %v1651 = vpop.permute.xlu0 %1650
        %v1652 = vlaneseq
        %v1653 = vshrl.u32 %v1652, 7
        %v1654 = vsub.s32 3, %v1653
        %v1655 = vrot.slane %v624, %v1654
        %1657 = vbcast.lane.b32.xlu0 %v1655, 256
        %v1658 = vpop.permute.xlu0 %1657
        %v1659 = vlaneseq
        %v1660 = vshrl.u32 %v1659, 7
        %v1661 = vsub.s32 4, %v1660
        %v1662 = vrot.slane %v624, %v1661
        %1664 = vbcast.lane.b32.xlu0 %v1662, 256
        %v1665 = vpop.permute.xlu0 %1664
        %v1666 = vlaneseq
        %v1667 = vshrl.u32 %v1666, 7
        %v1668 = vsub.s32 5, %v1667
        %v1669 = vrot.slane %v624, %v1668
        %1671 = vbcast.lane.b32.xlu0 %v1669, 256
        %v1672 = vpop.permute.xlu0 %1671
        %v1673 = vlaneseq
        %v1674 = vshrl.u32 %v1673, 7
        %v1675 = vsub.s32 6, %v1674
        %v1676 = vrot.slane %v624, %v1675
        %1678 = vbcast.lane.b32.xlu0 %v1676, 256
        %v1679 = vpop.permute.xlu0 %1678
        %v1680 = vlaneseq
        %v1681 = vshrl.u32 %v1680, 7
        %v1682 = vsub.s32 7, %v1681
        %v1683 = vrot.slane %v624, %v1682
        %1685 = vbcast.lane.b32.xlu0 %v1683, 256
        %v1686 = vpop.permute.xlu0 %1685
        %v1687 = vlaneseq
        %v1688 = vshrl.u32 %v1687, 7
        %v1689 = vsub.s32 0, %v1688
        %v1690 = vrot.slane %v625, %v1689
        %1692 = vbcast.lane.b32.xlu0 %v1690, 256
        %v1693 = vpop.permute.xlu0 %1692
        %v1694 = vlaneseq
        %v1695 = vshrl.u32 %v1694, 7
        %v1696 = vsub.s32 1, %v1695
        %v1697 = vrot.slane %v625, %v1696
        %1699 = vbcast.lane.b32.xlu0 %v1697, 256
        %v1700 = vpop.permute.xlu0 %1699
        %v1701 = vlaneseq
        %v1702 = vshrl.u32 %v1701, 7
        %v1703 = vsub.s32 2, %v1702
        %v1704 = vrot.slane %v625, %v1703
        %1706 = vbcast.lane.b32.xlu0 %v1704, 256
        %v1707 = vpop.permute.xlu0 %1706
        %v1708 = vlaneseq
        %v1709 = vshrl.u32 %v1708, 7
        %v1710 = vsub.s32 3, %v1709
        %v1711 = vrot.slane %v625, %v1710
        %1713 = vbcast.lane.b32.xlu0 %v1711, 256
        %v1714 = vpop.permute.xlu0 %1713
        %v1715 = vlaneseq
        %v1716 = vshrl.u32 %v1715, 7
        %v1717 = vsub.s32 4, %v1716
        %v1718 = vrot.slane %v625, %v1717
        %1720 = vbcast.lane.b32.xlu0 %v1718, 256
        %v1721 = vpop.permute.xlu0 %1720
        %v1722 = vlaneseq
        %v1723 = vshrl.u32 %v1722, 7
        %v1724 = vsub.s32 5, %v1723
        %v1725 = vrot.slane %v625, %v1724
        %1727 = vbcast.lane.b32.xlu0 %v1725, 256
        %v1728 = vpop.permute.xlu0 %1727
        %v1729 = vlaneseq
        %v1730 = vshrl.u32 %v1729, 7
        %v1731 = vsub.s32 6, %v1730
        %v1732 = vrot.slane %v625, %v1731
        %1734 = vbcast.lane.b32.xlu0 %v1732, 256
        %v1735 = vpop.permute.xlu0 %1734
        %v1736 = vlaneseq
        %v1737 = vshrl.u32 %v1736, 7
        %v1738 = vsub.s32 7, %v1737
        %v1739 = vrot.slane %v625, %v1738
        %1741 = vbcast.lane.b32.xlu0 %v1739, 256
        %v1742 = vpop.permute.xlu0 %1741
        %v1743 = vsub.f32 %v1637, %v1615
        %v1744 = vsub.f32 %v1644, %v1616
        %v1745 = vsub.f32 %v1651, %v1617
        %v1746 = vsub.f32 %v1658, %v1618
        %v1747 = vsub.f32 %v1665, %v1619
        %v1748 = vsub.f32 %v1672, %v1620
        %v1749 = vsub.f32 %v1679, %v1621
        %v1750 = vsub.f32 %v1686, %v1622
        %v1751 = vsub.f32 %v1693, %v1623
        %v1752 = vsub.f32 %v1700, %v1624
        %v1753 = vsub.f32 %v1707, %v1625
        %v1754 = vsub.f32 %v1714, %v1626
        %v1755 = vsub.f32 %v1721, %v1627
        %v1756 = vsub.f32 %v1728, %v1628
        %v1757 = vsub.f32 %v1735, %v1629
        %v1758 = vsub.f32 %v1742, %v1630
        %v1759 = vadd.f32 %v1455, %v1743
        %v1760 = vadd.f32 %v1456, %v1744
        %v1761 = vadd.f32 %v1457, %v1745
        %v1762 = vadd.f32 %v1458, %v1746
        %v1763 = vadd.f32 %v1459, %v1747
        %v1764 = vadd.f32 %v1460, %v1748
        %v1765 = vadd.f32 %v1461, %v1749
        %v1766 = vadd.f32 %v1462, %v1750
        %v1767 = vadd.f32 %v1463, %v1751
        %v1768 = vadd.f32 %v1464, %v1752
        %v1769 = vadd.f32 %v1465, %v1753
        %v1770 = vadd.f32 %v1466, %v1754
        %v1771 = vadd.f32 %v1467, %v1755
        %v1772 = vadd.f32 %v1468, %v1756
        %v1773 = vadd.f32 %v1469, %v1757
        %v1774 = vadd.f32 %v1470, %v1758
        %1775 = vst [vmem:[%s346] sm:$0xff] %v1759
        %1776 = vst [vmem:[%s346 + $0x8] sm:$0xff] %v1760
        %1777 = vst [vmem:[%s346 + $0x10] sm:$0xff] %v1761
        %1778 = vst [vmem:[%s346 + $0x18] sm:$0xff] %v1762
        %1779 = vst [vmem:[%s346 + $0x20] sm:$0xff] %v1763
        %1780 = vst [vmem:[%s346 + $0x28] sm:$0xff] %v1764
        %1781 = vst [vmem:[%s346 + $0x30] sm:$0xff] %v1765
        %1782 = vst [vmem:[%s346 + $0x38] sm:$0xff] %v1766
        %1783 = vst [vmem:[%s346 + $0x40] sm:$0xff] %v1767
        %1784 = vst [vmem:[%s346 + $0x48] sm:$0xff] %v1768
        %1785 = vst [vmem:[%s346 + $0x50] sm:$0xff] %v1769
        %1786 = vst [vmem:[%s346 + $0x58] sm:$0xff] %v1770
        %1787 = vst [vmem:[%s346 + $0x60] sm:$0xff] %v1771
        %1788 = vst [vmem:[%s346 + $0x68] sm:$0xff] %v1772
        %1789 = vst [vmem:[%s346 + $0x70] sm:$0xff] %v1773
        %1790 = vst [vmem:[%s346 + $0x78] sm:$0xff] %v1774
        %s1791 = sand.u32 %s216, 1
        %s1792 = scalar_lea.sflag [#allocation4], %s1791
        %s1793 = sand.u32 %s216, 1
        %s1794 = smul.addr %s1793, 128
        %s1795 = scalar_lea.vmem [#allocation5], %s1794
        // Predicated region
        $region53: #{tpu_custom_call.1} parent=47 // pred_check
          %p1796 = pneg %p226
        $region54: #{tpu_custom_call.1} parent=47 // pred_check_branch
          %1798 = sbr.rel (%p1796) target = $region56
        $region55: #{tpu_custom_call.1} parent=47 // pred_region
          %s1799 = smul.u32 16, %s27
          %s1801 = ssub.s32 2048, 2048
          %1802 = vsyncadd %s1792, %s1801
          %s1803 = sadd.s32 %s26, %s1799
          %s1804 = smul.addr %s1803, 128
          %s1805 = scalar_lea.hbm %s7, %s1804
          %s1806 = sshll.u32 %s1795, 4
          %s1807 = int_to_ptr.vmem [resolvable:$true] %s1806
          %1812 = dma.vmem_to_hbm [thread:$0]  %s1807, 2048, %s1805, %s1792, 128, 128, 8
        $region56: #{tpu_custom_call.1} parent=47 // pred_fallthru
          _
      $region48: #{tpu_custom_call.1} parent=5 // pred_fallthru
        _
      %p1813 = scmp.le.s32.totalorder 2, %s17
      // Predicated region
      $region57: #{tpu_custom_call.1} parent=5 // pred_check
        %p1814 = pneg %p1813
      $region58: #{tpu_custom_call.1} parent=5 // pred_check_branch
        %1816 = sbr.rel (%p1814) target = $region60
      $region59: #{tpu_custom_call.1} parent=5 // pred_region
        %s1817 = ssub.s32 %s17, 2
        // Predicated region
        $region61: #{tpu_custom_call.1} parent=59 // pred_check
          %p1818 = pneg %p232
        $region62: #{tpu_custom_call.1} parent=59 // pred_check_branch
          %1820 = sbr.rel (%p1818) target = $region64
        $region63: #{tpu_custom_call.1} parent=59 // pred_region
          %s1821 = sand.u32 %s217, 1
          %s1822 = scalar_lea.sflag [#allocation4], %s1821
          %s1823 = sand.u32 %s217, 1
          %s1824 = smul.addr %s1823, 128
          %s1825 = scalar_lea.vmem [#allocation5], %s1824
          %1826 = dma.done %s1822, 2048
        $region64: #{tpu_custom_call.1} parent=59 // pred_fallthru
          _
      $region60: #{tpu_custom_call.1} parent=5 // pred_fallthru
        _
    $region6: #{tpu_custom_call.1} parent=1 // loop_footer
      %s21 = sadd.s32 1, %s17
    $region7: #{tpu_custom_call.1} parent=1 // loop_footer_branch
      %16 = sbr.rel target = $region3
    $region8: #{tpu_custom_call.1} parent=1 // loop_exit
      _
    %1827 = vsyncpa [#allocation3], 1
    %s1828 = scalar_lea.sflag [#allocation3], 1
    %1829 = vsyncpa %s1828, 1
    %1830 = vsyncpa [#allocation4], 1
    %s1831 = scalar_lea.sflag [#allocation4], 1
    %1832 = vsyncpa %s1831, 1

</llo_original>
